<compile_context>
chip_gen: v7x
topology: tpu7x:2x2x1
jax: 0.10.0
libtpu: 0.0.40
codegen_flags: <defaults>
</compile_context>

<pallas_src>
import functools
import math

import jax
import jax.numpy as jnp
from jax.experimental import pallas as pl
from jax.experimental.pallas import tpu as pltpu

# ----------------------------- model config ---------------------------------
NHEAD = 4          # number of attention heads
D_MODEL = 32       # embedding dim
D_FF = 64          # feed-forward hidden dim
LN_EPS = 1e-5
_VEC_ROWS = 8      # rows in the packed bias / LayerNorm slab
_NEG_INF = -1e30   # additive mask value for disallowed attention entries


# ----------------------------- Pallas kernel ---------------------------------
def _encoder_layer_kernel(*refs, B, T, H, has_bias):
    if has_bias:
        (src_ref, bias_ref, wqkv_ref, wo_ref, w1_ref, w2_ref, vec_ref,
         out_ref) = refs
    else:
        src_ref, wqkv_ref, wo_ref, w1_ref, w2_ref, vec_ref, out_ref = refs
        bias_ref = None

    N, E = src_ref.shape            # N = B*T (whole batch folded)
    F = w1_ref.shape[1]
    Hd = E // H

    x = src_ref[...]                # (N, E)  f32 activations
    vec = vec_ref[...]              # (8, W)  packed bias / LN slab

    # static slices of the packed parameter slab (hoisted once)
    b_qkv = vec[0:1, :3 * E]        # (1, 3E)  fused QKV bias (Q part pre-scaled)
    b_o = vec[1:2, :E]              # (1, E)   out-proj bias
    b_1 = vec[2:3, :F]              # (1, F)   FFN bias 1
    b_2 = vec[3:4, :E]              # (1, E)   FFN bias 2
    g1, be1 = vec[4:5, :E], vec[5:6, :E]   # LayerNorm1 gamma / beta
    g2, be2 = vec[6:7, :E], vec[7:8, :E]   # LayerNorm2 gamma / beta

    def layer_norm(v, g, b):
        mu = jnp.mean(v, axis=-1, keepdims=True)
        var = jnp.mean((v - mu) ** 2, axis=-1, keepdims=True)
        return (v - mu) * jax.lax.rsqrt(var + LN_EPS) * g + b

    # ---- self-attention: fused QKV projection on all B*T rows at once ------
    qkv = jnp.dot(x.astype(jnp.bfloat16), wqkv_ref[...],
                  preferred_element_type=jnp.float32) + b_qkv        # (N, 3E)

    # one relayout for all of q/k/v: (N, 3E) -> (3H, N, Hd); per-head slices
    # then land on the cheap leading dim instead of 32/64-lane boundaries.
    qkv_h = qkv.reshape(N, 3 * H, Hd).transpose(1, 0, 2)             # (3H,N,Hd)
    q = qkv_h[:H]                                                    # (H, N, Hd)
    k = qkv_h[H:2 * H]
    v = qkv_h[2 * H:]

    s = jnp.einsum('hqd,hkd->hqk',
                   q.astype(jnp.bfloat16), k.astype(jnp.bfloat16),
                   preferred_element_type=jnp.float32)               # (H, N, N)

    if has_bias:
        # combined (block-diagonal + user src_mask) additive bias from wrapper
        s = s + bias_ref[...][None, :, :]
    elif B > 1:
        # mask-less path: only forbid cross-batch attention, built in-kernel
        rows = jax.lax.broadcasted_iota(jnp.int32, (N, N), 0)
        cols = jax.lax.broadcasted_iota(jnp.int32, (N, N), 1)
        if T & (T - 1) == 0:                      # power-of-two T -> shifts
            sh = T.bit_length() - 1
            same = (rows >> sh) == (cols >> sh)
        else:
            same = (rows // T) == (cols // T)
        s = s + jnp.where(same, 0.0, _NEG_INF).astype(jnp.float32)[None, :, :]

    s = s - jnp.max(s, axis=-1, keepdims=True)
    e = jnp.exp(s)
    p = e * pl.reciprocal(jnp.sum(e, axis=-1, keepdims=True), approx=True)

    o = jnp.einsum('hqk,hkd->hqd',
                   p.astype(jnp.bfloat16), v.astype(jnp.bfloat16),
                   preferred_element_type=jnp.float32)               # (H, N, Hd)
    o = o.transpose(1, 0, 2).reshape(N, E)                           # (N, E)
    o = jnp.dot(o.astype(jnp.bfloat16), wo_ref[...],
                preferred_element_type=jnp.float32) + b_o

    x = layer_norm(x + o, g1, be1)

    # ---- feed-forward block ----
    h1 = jnp.maximum(
        jnp.dot(x.astype(jnp.bfloat16), w1_ref[...],
                preferred_element_type=jnp.float32) + b_1, 0.0)
    ff = jnp.dot(h1.astype(jnp.bfloat16), w2_ref[...],
                 preferred_element_type=jnp.float32) + b_2
    x = layer_norm(x + ff, g2, be2)

    out_ref[...] = x                                                 # one store


# ----------------------------- wrapper ---------------------------------------
def transformer_encoder_layer_forward(src, params, src_mask=None):
    """Functional TransformerEncoderLayer.forward (batch-first, inference)."""
    B, T, E = src.shape
    wqkv, wo, w1, w2, vec = params
    F = w1.shape[1]
    H = NHEAD
    N = B * T

    src2d = src.reshape(N, E).astype(jnp.float32)   # free reshape, one block
    has_bias = src_mask is not None

    inputs = [src2d]
    in_specs = [pl.BlockSpec((N, E), lambda i: (0, 0))]
    if has_bias:
        # additive (T,T) mask tiled over the folded batch, combined with the
        # block-diagonal "no cross-batch attention" bias.
        bias = jnp.tile(src_mask.astype(jnp.float32), (B, B))
        if B > 1:
            bid = jnp.arange(N) // T
            bias = jnp.where(bid[:, None] == bid[None, :], bias, _NEG_INF)
        inputs.append(bias)
        in_specs.append(pl.BlockSpec((N, N), lambda i: (0, 0)))
    inputs += [wqkv, wo, w1, w2, vec]
    in_specs += [
        pl.BlockSpec(wqkv.shape, lambda i: (0, 0)),   # fused QKV weight (bf16)
        pl.BlockSpec(wo.shape, lambda i: (0, 0)),     # out-proj weight
        pl.BlockSpec(w1.shape, lambda i: (0, 0)),     # FFN weight 1
        pl.BlockSpec(w2.shape, lambda i: (0, 0)),     # FFN weight 2
        pl.BlockSpec(vec.shape, lambda i: (0, 0)),    # packed bias / LN slab
    ]

    kernel = functools.partial(_encoder_layer_kernel,
                               B=B, T=T, H=H, has_bias=has_bias)

    cost = pl.CostEstimate(
        flops=2 * N * (3 * E * E + 2 * N * E + E * E + 2 * E * F),
        transcendentals=H * N * (N + 1) + 4 * N,
        bytes_accessed=(2 * N * E * 4 + (N * N * 4 if has_bias else 0)
                        + vec.size * 4
                        + 2 * (wqkv.size + wo.size + w1.size + w2.size)),
    )

    out2d = pl.pallas_call(
        kernel,
        grid=(1,),                                   # whole layer in one step
        in_specs=in_specs,
        out_specs=pl.BlockSpec((N, E), lambda i: (0, 0)),
        out_shape=jax.ShapeDtypeStruct((N, E), jnp.float32),
        compiler_params=pltpu.CompilerParams(
            dimension_semantics=("arbitrary",)),
        cost_estimate=cost,
    )(*inputs)
    return out2d.reshape(B, T, E)


# ----------------------------- parameter init --------------------------------
def init_params(key, d_model, d_ff, nhead=NHEAD):
    E, F = d_model, d_ff
    Hd = E // nhead
    scale = 1.0 / math.sqrt(Hd)
    W = max(3 * E, F)               # slab wide enough for FFN bias (d_ff=4E ok)
    ks = jax.random.split(key, 7)

    def w(k, shape):
        bound = 1.0 / math.sqrt(shape[0])
        return jax.random.uniform(k, shape, jnp.float32, -bound, bound)

    # weights pre-transposed to [in, out]; 1/sqrt(head_dim) folded into the Q
    # columns AND the Q bias once here (free host-side transform).
    wqkv = w(ks[0], (E, 3 * E))
    b_qkv = 0.02 * jax.random.normal(ks[4], (3 * E,), jnp.float32)
    wqkv = wqkv.at[:, :E].multiply(scale)
    b_qkv = b_qkv.at[:E].multiply(scale)

    wqkv = wqkv.astype(jnp.bfloat16)       # MXU fast path, half weight DMA
    wo = w(ks[1], (E, E)).astype(jnp.bfloat16)
    w1 = w(ks[2], (E, F)).astype(jnp.bfloat16)
    w2 = w(ks[3], (F, E)).astype(jnp.bfloat16)

    # all biases + LayerNorm gamma/beta packed into one (8, W) f32 slab
    vec = jnp.zeros((_VEC_ROWS, W), jnp.float32)
    vec = vec.at[0, :3 * E].set(b_qkv)                                   # QKV bias
    vec = vec.at[1, :E].set(0.02 * jax.random.normal(ks[5], (E,)))       # out-proj bias
    vec = vec.at[2, :F].set(0.02 * jax.random.normal(ks[6], (F,)))       # FFN bias 1
    vec = vec.at[3, :E].set(jnp.zeros((E,), jnp.float32))                # FFN bias 2
    vec = vec.at[4, :E].set(jnp.ones((E,), jnp.float32))                 # LN1 gamma
    vec = vec.at[5, :E].set(jnp.zeros((E,), jnp.float32))                # LN1 beta
    vec = vec.at[6, :E].set(jnp.ones((E,), jnp.float32))                 # LN2 gamma
    vec = vec.at[7, :E].set(jnp.zeros((E,), jnp.float32))                # LN2 beta
    return wqkv, wo, w1, w2, vec


# ----------------------------- demo ------------------------------------------
if __name__ == "__main__":
    B, T = 2, 8
    key = jax.random.PRNGKey(0)
    k_src, k_par = jax.random.split(key)

    src = jax.random.normal(k_src, (B, T, D_MODEL), jnp.float32)
    params = init_params(k_par, D_MODEL, D_FF)

    out = transformer_encoder_layer_forward(src, params, src_mask=None)
    jax.block_until_ready(out)

    assert out.shape == (B, T, D_MODEL)
    assert bool(jnp.all(jnp.isfinite(out)))
    print("KERNEL_OK")
</pallas_src>

<mosaic_0001>
module attributes {stable_mosaic.version = 11 : i64} {
  func.func @_encoder_layer_kernel(%arg0: i32, %arg1: memref<16x32xf32, #tpu.memory_space<vmem>>, %arg2: memref<32x96xbf16, #tpu.memory_space<vmem>>, %arg3: memref<32x32xbf16, #tpu.memory_space<vmem>>, %arg4: memref<32x64xbf16, #tpu.memory_space<vmem>>, %arg5: memref<64x32xbf16, #tpu.memory_space<vmem>>, %arg6: memref<8x96xf32, #tpu.memory_space<vmem>>, %arg7: memref<16x32xf32, #tpu.memory_space<vmem>>) attributes {dimension_semantics = [#tpu.dimension_semantics<arbitrary>], iteration_bounds = array<i64: 1>, scalar_prefetch = 0 : i64, scratch_operands = 0 : i64, tpu.core_type = #tpu.core_type<tc>, window_params = [{pipeline_mode = #tpu.pipeline_mode<synchronous>, transform_indices = @transform_0, window_bounds = array<i64: 16, 32>}, {pipeline_mode = #tpu.pipeline_mode<synchronous>, transform_indices = @transform_1, window_bounds = array<i64: 32, 96>}, {pipeline_mode = #tpu.pipeline_mode<synchronous>, transform_indices = @transform_2, window_bounds = array<i64: 32, 32>}, {pipeline_mode = #tpu.pipeline_mode<synchronous>, transform_indices = @transform_3, window_bounds = array<i64: 32, 64>}, {pipeline_mode = #tpu.pipeline_mode<synchronous>, transform_indices = @transform_4, window_bounds = array<i64: 64, 32>}, {pipeline_mode = #tpu.pipeline_mode<synchronous>, transform_indices = @transform_5, window_bounds = array<i64: 8, 96>}, {pipeline_mode = #tpu.pipeline_mode<synchronous>, transform_indices = @transform_6, window_bounds = array<i64: 16, 32>}]} {
    %c0 = arith.constant 0 : index
    %c0_0 = arith.constant 0 : index
    %0 = vector.load %arg1[%c0, %c0_0] : memref<16x32xf32, #tpu.memory_space<vmem>>, vector<16x32xf32>
    %c0_1 = arith.constant 0 : index
    %c0_2 = arith.constant 0 : index
    %1 = vector.load %arg6[%c0_1, %c0_2] : memref<8x96xf32, #tpu.memory_space<vmem>>, vector<8x96xf32>
    %2 = vector.extract_strided_slice %1 {offsets = [0, 0], sizes = [1, 96], strides = [1, 1]} : vector<8x96xf32> to vector<1x96xf32>
    %3 = vector.extract_strided_slice %1 {offsets = [1, 0], sizes = [1, 32], strides = [1, 1]} : vector<8x96xf32> to vector<1x32xf32>
    %4 = vector.extract_strided_slice %1 {offsets = [2, 0], sizes = [1, 64], strides = [1, 1]} : vector<8x96xf32> to vector<1x64xf32>
    %5 = vector.extract_strided_slice %1 {offsets = [3, 0], sizes = [1, 32], strides = [1, 1]} : vector<8x96xf32> to vector<1x32xf32>
    %6 = vector.extract_strided_slice %1 {offsets = [4, 0], sizes = [1, 32], strides = [1, 1]} : vector<8x96xf32> to vector<1x32xf32>
    %7 = vector.extract_strided_slice %1 {offsets = [5, 0], sizes = [1, 32], strides = [1, 1]} : vector<8x96xf32> to vector<1x32xf32>
    %8 = vector.extract_strided_slice %1 {offsets = [6, 0], sizes = [1, 32], strides = [1, 1]} : vector<8x96xf32> to vector<1x32xf32>
    %9 = vector.extract_strided_slice %1 {offsets = [7, 0], sizes = [1, 32], strides = [1, 1]} : vector<8x96xf32> to vector<1x32xf32>
    %10 = arith.truncf %0 : vector<16x32xf32> to vector<16x32xbf16>
    %c0_3 = arith.constant 0 : index
    %c0_4 = arith.constant 0 : index
    %11 = vector.load %arg2[%c0_3, %c0_4] : memref<32x96xbf16, #tpu.memory_space<vmem>>, vector<32x96xbf16>
    %cst = arith.constant dense<0.000000e+00> : vector<16x96xf32>
    %12 = tpu.matmul %10, %11, %cst {dimension_numbers = #tpu.dot_dimension_numbers<[1], [0], [0], [1], [0, 0, 1, 1], [], []>} : vector<16x32xbf16>, vector<32x96xbf16>, vector<16x96xf32> -> vector<16x96xf32>
    %13 = vector.broadcast %2 : vector<1x96xf32> to vector<16x96xf32>
    %14 = arith.addf %12, %13 : vector<16x96xf32>
    %15 = vector.shape_cast %14 : vector<16x96xf32> to vector<16x12x8xf32>
    %16 = tpu.transpose %15, [1, 0, 2] : vector<16x12x8xf32> -> vector<12x16x8xf32>
    %17 = vector.extract_strided_slice %16 {offsets = [0, 0, 0], sizes = [4, 16, 8], strides = [1, 1, 1]} : vector<12x16x8xf32> to vector<4x16x8xf32>
    %18 = vector.extract_strided_slice %16 {offsets = [4, 0, 0], sizes = [4, 16, 8], strides = [1, 1, 1]} : vector<12x16x8xf32> to vector<4x16x8xf32>
    %19 = vector.extract_strided_slice %16 {offsets = [8, 0, 0], sizes = [4, 16, 8], strides = [1, 1, 1]} : vector<12x16x8xf32> to vector<4x16x8xf32>
    %20 = arith.truncf %17 : vector<4x16x8xf32> to vector<4x16x8xbf16>
    %21 = arith.truncf %18 : vector<4x16x8xf32> to vector<4x16x8xbf16>
    "tpu.trace_start"() <{level = 10 : i32, message = "hqd,hkd->hqk"}> : () -> ()
    %cst_5 = arith.constant dense<0.000000e+00> : vector<4x16x16xf32>
    %22 = tpu.matmul %20, %21, %cst_5 {dimension_numbers = #tpu.dot_dimension_numbers<[2], [2], [1], [1], [0, 0, 0, 1, 1, 1], [0], [0]>} : vector<4x16x8xbf16>, vector<4x16x8xbf16>, vector<4x16x16xf32> -> vector<4x16x16xf32>
    "tpu.trace_stop"() : () -> ()
    %23 = tpu.iota {dimensions = array<i32: 0>} : vector<16x16xi32>
    %24 = tpu.iota {dimensions = array<i32: 1>} : vector<16x16xi32>
    %c3_i32 = arith.constant 3 : i32
    %25 = vector.broadcast %c3_i32 : i32 to vector<16x16xi32>
    %26 = arith.shrsi %23, %25 : vector<16x16xi32>
    %c3_i32_6 = arith.constant 3 : i32
    %27 = vector.broadcast %c3_i32_6 : i32 to vector<16x16xi32>
    %28 = arith.shrsi %24, %27 : vector<16x16xi32>
    %29 = arith.cmpi eq, %26, %28 : vector<16x16xi32>
    %cst_7 = arith.constant 0.000000e+00 : f32
    %cst_8 = arith.constant -1.000000e+30 : f32
    %30 = vector.broadcast %cst_7 : f32 to vector<16x16xf32>
    %31 = vector.broadcast %cst_8 : f32 to vector<16x16xf32>
    %32 = arith.select %29, %30, %31 : vector<16x16xi1>, vector<16x16xf32>
    %33 = vector.shape_cast %32 : vector<16x16xf32> to vector<1x16x16xf32>
    %34 = vector.broadcast %33 : vector<1x16x16xf32> to vector<4x16x16xf32>
    %35 = arith.addf %22, %34 : vector<4x16x16xf32>
    %cst_9 = arith.constant dense<0xFF800000> : vector<4x16xf32>
    %36 = vector.multi_reduction <maximumf>, %35, %cst_9 [2] : vector<4x16x16xf32> to vector<4x16xf32>
    %37 = vector.shape_cast %36 : vector<4x16xf32> to vector<4x16x1xf32>
    %38 = vector.broadcast %37 : vector<4x16x1xf32> to vector<4x16x16xf32>
    %39 = arith.subf %35, %38 : vector<4x16x16xf32>
    %40 = math.exp %39 : vector<4x16x16xf32>
    %cst_10 = arith.constant dense<0.000000e+00> : vector<4x16xf32>
    %41 = vector.multi_reduction <add>, %40, %cst_10 [2] : vector<4x16x16xf32> to vector<4x16xf32>
    %42 = vector.shape_cast %41 : vector<4x16xf32> to vector<4x16x1xf32>
    %43 = tpu.reciprocal %42 {approx = true} : vector<4x16x1xf32> -> vector<4x16x1xf32>
    %44 = vector.broadcast %43 : vector<4x16x1xf32> to vector<4x16x16xf32>
    %45 = arith.mulf %40, %44 : vector<4x16x16xf32>
    %46 = arith.truncf %45 : vector<4x16x16xf32> to vector<4x16x16xbf16>
    %47 = arith.truncf %19 : vector<4x16x8xf32> to vector<4x16x8xbf16>
    "tpu.trace_start"() <{level = 10 : i32, message = "hqk,hkd->hqd"}> : () -> ()
    %cst_11 = arith.constant dense<0.000000e+00> : vector<4x16x8xf32>
    %48 = tpu.matmul %46, %47, %cst_11 {dimension_numbers = #tpu.dot_dimension_numbers<[2], [1], [1], [2], [0, 0, 0, 1, 1, 2], [0], [0]>} : vector<4x16x16xbf16>, vector<4x16x8xbf16>, vector<4x16x8xf32> -> vector<4x16x8xf32>
    "tpu.trace_stop"() : () -> ()
    %49 = tpu.transpose %48, [1, 0, 2] : vector<4x16x8xf32> -> vector<16x4x8xf32>
    %50 = vector.shape_cast %49 : vector<16x4x8xf32> to vector<16x32xf32>
    %51 = arith.truncf %50 : vector<16x32xf32> to vector<16x32xbf16>
    %c0_12 = arith.constant 0 : index
    %c0_13 = arith.constant 0 : index
    %52 = vector.load %arg3[%c0_12, %c0_13] : memref<32x32xbf16, #tpu.memory_space<vmem>>, vector<32x32xbf16>
    %cst_14 = arith.constant dense<0.000000e+00> : vector<16x32xf32>
    %53 = tpu.matmul %51, %52, %cst_14 {dimension_numbers = #tpu.dot_dimension_numbers<[1], [0], [0], [1], [0, 0, 1, 1], [], []>} : vector<16x32xbf16>, vector<32x32xbf16>, vector<16x32xf32> -> vector<16x32xf32>
    %54 = vector.broadcast %3 : vector<1x32xf32> to vector<16x32xf32>
    %55 = arith.addf %53, %54 : vector<16x32xf32>
    %56 = arith.addf %0, %55 : vector<16x32xf32>
    %cst_15 = arith.constant dense<0.000000e+00> : vector<16xf32>
    %57 = vector.multi_reduction <add>, %56, %cst_15 [1] : vector<16x32xf32> to vector<16xf32>
    %58 = vector.shape_cast %57 : vector<16xf32> to vector<16x1xf32>
    %cst_16 = arith.constant 3.200000e+01 : f32
    %59 = vector.broadcast %cst_16 : f32 to vector<16x1xf32>
    %60 = arith.divf %58, %59 : vector<16x1xf32>
    %61 = vector.broadcast %60 : vector<16x1xf32> to vector<16x32xf32>
    %62 = arith.subf %56, %61 : vector<16x32xf32>
    %63 = arith.mulf %62, %62 : vector<16x32xf32>
    %cst_17 = arith.constant dense<0.000000e+00> : vector<16xf32>
    %64 = vector.multi_reduction <add>, %63, %cst_17 [1] : vector<16x32xf32> to vector<16xf32>
    %65 = vector.shape_cast %64 : vector<16xf32> to vector<16x1xf32>
    %cst_18 = arith.constant 3.200000e+01 : f32
    %66 = vector.broadcast %cst_18 : f32 to vector<16x1xf32>
    %67 = arith.divf %65, %66 : vector<16x1xf32>
    %68 = vector.broadcast %60 : vector<16x1xf32> to vector<16x32xf32>
    %69 = arith.subf %56, %68 : vector<16x32xf32>
    %cst_19 = arith.constant 9.99999974E-6 : f32
    %70 = vector.broadcast %cst_19 : f32 to vector<16x1xf32>
    %71 = arith.addf %67, %70 : vector<16x1xf32>
    %72 = math.rsqrt %71 : vector<16x1xf32>
    %73 = vector.broadcast %72 : vector<16x1xf32> to vector<16x32xf32>
    %74 = arith.mulf %69, %73 : vector<16x32xf32>
    %75 = vector.broadcast %6 : vector<1x32xf32> to vector<16x32xf32>
    %76 = arith.mulf %74, %75 : vector<16x32xf32>
    %77 = vector.broadcast %7 : vector<1x32xf32> to vector<16x32xf32>
    %78 = arith.addf %76, %77 : vector<16x32xf32>
    %79 = arith.truncf %78 : vector<16x32xf32> to vector<16x32xbf16>
    %c0_20 = arith.constant 0 : index
    %c0_21 = arith.constant 0 : index
    %80 = vector.load %arg4[%c0_20, %c0_21] : memref<32x64xbf16, #tpu.memory_space<vmem>>, vector<32x64xbf16>
    %cst_22 = arith.constant dense<0.000000e+00> : vector<16x64xf32>
    %81 = tpu.matmul %79, %80, %cst_22 {dimension_numbers = #tpu.dot_dimension_numbers<[1], [0], [0], [1], [0, 0, 1, 1], [], []>} : vector<16x32xbf16>, vector<32x64xbf16>, vector<16x64xf32> -> vector<16x64xf32>
    %82 = vector.broadcast %4 : vector<1x64xf32> to vector<16x64xf32>
    %83 = arith.addf %81, %82 : vector<16x64xf32>
    %cst_23 = arith.constant 0.000000e+00 : f32
    %84 = vector.broadcast %cst_23 : f32 to vector<16x64xf32>
    %85 = arith.maximumf %83, %84 : vector<16x64xf32>
    %86 = arith.truncf %85 : vector<16x64xf32> to vector<16x64xbf16>
    %c0_24 = arith.constant 0 : index
    %c0_25 = arith.constant 0 : index
    %87 = vector.load %arg5[%c0_24, %c0_25] : memref<64x32xbf16, #tpu.memory_space<vmem>>, vector<64x32xbf16>
    %cst_26 = arith.constant dense<0.000000e+00> : vector<16x32xf32>
    %88 = tpu.matmul %86, %87, %cst_26 {dimension_numbers = #tpu.dot_dimension_numbers<[1], [0], [0], [1], [0, 0, 1, 1], [], []>} : vector<16x64xbf16>, vector<64x32xbf16>, vector<16x32xf32> -> vector<16x32xf32>
    %89 = vector.broadcast %5 : vector<1x32xf32> to vector<16x32xf32>
    %90 = arith.addf %88, %89 : vector<16x32xf32>
    %91 = arith.addf %78, %90 : vector<16x32xf32>
    %cst_27 = arith.constant dense<0.000000e+00> : vector<16xf32>
    %92 = vector.multi_reduction <add>, %91, %cst_27 [1] : vector<16x32xf32> to vector<16xf32>
    %93 = vector.shape_cast %92 : vector<16xf32> to vector<16x1xf32>
    %cst_28 = arith.constant 3.200000e+01 : f32
    %94 = vector.broadcast %cst_28 : f32 to vector<16x1xf32>
    %95 = arith.divf %93, %94 : vector<16x1xf32>
    %96 = vector.broadcast %95 : vector<16x1xf32> to vector<16x32xf32>
    %97 = arith.subf %91, %96 : vector<16x32xf32>
    %98 = arith.mulf %97, %97 : vector<16x32xf32>
    %cst_29 = arith.constant dense<0.000000e+00> : vector<16xf32>
    %99 = vector.multi_reduction <add>, %98, %cst_29 [1] : vector<16x32xf32> to vector<16xf32>
    %100 = vector.shape_cast %99 : vector<16xf32> to vector<16x1xf32>
    %cst_30 = arith.constant 3.200000e+01 : f32
    %101 = vector.broadcast %cst_30 : f32 to vector<16x1xf32>
    %102 = arith.divf %100, %101 : vector<16x1xf32>
    %103 = vector.broadcast %95 : vector<16x1xf32> to vector<16x32xf32>
    %104 = arith.subf %91, %103 : vector<16x32xf32>
    %cst_31 = arith.constant 9.99999974E-6 : f32
    %105 = vector.broadcast %cst_31 : f32 to vector<16x1xf32>
    %106 = arith.addf %102, %105 : vector<16x1xf32>
    %107 = math.rsqrt %106 : vector<16x1xf32>
    %108 = vector.broadcast %107 : vector<16x1xf32> to vector<16x32xf32>
    %109 = arith.mulf %104, %108 : vector<16x32xf32>
    %110 = vector.broadcast %8 : vector<1x32xf32> to vector<16x32xf32>
    %111 = arith.mulf %109, %110 : vector<16x32xf32>
    %112 = vector.broadcast %9 : vector<1x32xf32> to vector<16x32xf32>
    %113 = arith.addf %111, %112 : vector<16x32xf32>
    %c0_32 = arith.constant 0 : index
    %c0_33 = arith.constant 0 : index
    %114 = vector.load %arg7[%c0_32, %c0_33] : memref<16x32xf32, #tpu.memory_space<vmem>>, vector<16x32xf32>
    tpu.vector_store %arg7[%c0_32, %c0_33], %113 {strides = array<i32>} : memref<16x32xf32, #tpu.memory_space<vmem>>, vector<16x32xf32>,
    return
  }
  func.func @transform_0(%arg0: i32) -> (i32, i32) {
    %c0_i32 = arith.constant 0 : i32
    %c0_i32_0 = arith.constant 0 : i32
    %c0_i32_1 = arith.constant 0 : i32
    return %c0_i32, %c0_i32_0 : i32, i32
  }
  func.func @transform_1(%arg0: i32) -> (i32, i32) {
    %c0_i32 = arith.constant 0 : i32
    %c0_i32_0 = arith.constant 0 : i32
    %c0_i32_1 = arith.constant 0 : i32
    return %c0_i32, %c0_i32_0 : i32, i32
  }
  func.func @transform_2(%arg0: i32) -> (i32, i32) {
    %c0_i32 = arith.constant 0 : i32
    %c0_i32_0 = arith.constant 0 : i32
    %c0_i32_1 = arith.constant 0 : i32
    return %c0_i32, %c0_i32_0 : i32, i32
  }
  func.func @transform_3(%arg0: i32) -> (i32, i32) {
    %c0_i32 = arith.constant 0 : i32
    %c0_i32_0 = arith.constant 0 : i32
    %c0_i32_1 = arith.constant 0 : i32
    return %c0_i32, %c0_i32_0 : i32, i32
  }
  func.func @transform_4(%arg0: i32) -> (i32, i32) {
    %c0_i32 = arith.constant 0 : i32
    %c0_i32_0 = arith.constant 0 : i32
    %c0_i32_1 = arith.constant 0 : i32
    return %c0_i32, %c0_i32_0 : i32, i32
  }
  func.func @transform_5(%arg0: i32) -> (i32, i32) {
    %c0_i32 = arith.constant 0 : i32
    %c0_i32_0 = arith.constant 0 : i32
    %c0_i32_1 = arith.constant 0 : i32
    return %c0_i32, %c0_i32_0 : i32, i32
  }
  func.func @transform_6(%arg0: i32) -> (i32, i32) {
    %c0_i32 = arith.constant 0 : i32
    %c0_i32_0 = arith.constant 0 : i32
    %c0_i32_1 = arith.constant 0 : i32
    return %c0_i32, %c0_i32_0 : i32, i32
  }
}

</mosaic_0001>

<llo_original>
// kernel: tpu_custom_call.1
$region0: #{tpu_custom_call.1}
  #allocation0 [shape = 'u32[]', space=smem, size = 0x4, offset = 0x4, fixed_abs, tag = 'smem constant byte address 0x4 - core index']
  #allocation1 [shape = 'u32[144,128]{1,0:T(1,128)}', space=vmem, size = 0x12000, scoped, tag = 'internal scratch']
  %s0 = inlined_call_operand.vmem [shape: f32[16,32], index: 0, kind: input, shape index: {}]
  %s1 = inlined_call_operand.vmem [shape: bf16[32,96], index: 1, kind: input, shape index: {}]
  %s2 = inlined_call_operand.vmem [shape: bf16[32,32], index: 2, kind: input, shape index: {}]
  %s3 = inlined_call_operand.hbm [shape: bf16[32,64], index: 3, kind: input, shape index: {}]
  %s4 = inlined_call_operand.vmem [shape: bf16[64,32], index: 4, kind: input, shape index: {}]
  %s5 = inlined_call_operand.vmem [shape: f32[8,96], index: 5, kind: input, shape index: {}]
  %s6 = inlined_call_operand.hbm [shape: f32[16,32], index: 6, kind: output, shape index: {}]
  %s7 = sld [smem:[#allocation0]]
  $region38: #{tpu_custom_call.1} parent=0
    _
  %s9 = ssub.s32 1, %s7
  %s10 = scalar_select 0, %s9, %s7
  $region1: #{tpu_custom_call.1} parent=0
    #allocation2 [shape = 'u8[8192]{0}', space=vmem, size = 0x2000, scoped, tag = 'input window, operand 3, single buffered']
    #allocation3 [shape = 's32[1]{0}', space=sflag, size = 0x4, scoped, tag = 'scoped memory for tpu_custom_call.1']
    #allocation4 [shape = 's32[1]{0}', space=sflag, size = 0x4, scoped, tag = 'scoped memory for tpu_custom_call.1']
    #allocation5 [shape = 'u8[8192]{0}', space=vmem, size = 0x2000, scoped, tag = 'output window, operand 0, single buffered']
    %11 = vsyncpa [#allocation3], 0
    %12 = vsyncpa [#allocation4], 0
    // Predicated region
    $region2: #{tpu_custom_call.1} parent=1 // pred_check
      _
    $region3: #{tpu_custom_call.1} parent=1 // pred_check_branch
      %14 = sbr.rel (0) target = $region5
    $region4: #{tpu_custom_call.1} parent=1 // pred_region
      _
    $region5: #{tpu_custom_call.1} parent=1 // pred_fallthru
      _
    // Predicated region
    $region6: #{tpu_custom_call.1} parent=1 // pred_check
      _
    $region7: #{tpu_custom_call.1} parent=1 // pred_check_branch
      %16 = sbr.rel (0) target = $region9
    $region8: #{tpu_custom_call.1} parent=1 // pred_region
      _
    $region9: #{tpu_custom_call.1} parent=1 // pred_fallthru
      _
    // Predicated region
    $region10: #{tpu_custom_call.1} parent=1 // pred_check
      _
    $region11: #{tpu_custom_call.1} parent=1 // pred_check_branch
      %18 = sbr.rel (0) target = $region13
    $region12: #{tpu_custom_call.1} parent=1 // pred_region
      _
    $region13: #{tpu_custom_call.1} parent=1 // pred_fallthru
      _
    // Predicated region
    $region14: #{tpu_custom_call.1} parent=1 // pred_check
      _
    $region15: #{tpu_custom_call.1} parent=1 // pred_check_branch
      %20 = sbr.rel (0) target = $region17
    $region16: #{tpu_custom_call.1} parent=1 // pred_region
      %s22 = ssub.s32 256, 256
      %23 = vsyncadd [#allocation3], %s22
      %s24 = sshll.u32 [#allocation2], 4
      %s25 = int_to_ptr.vmem [resolvable:$true] %s24
      %30 = dma.hbm_to_vmem [thread:$0]  %s3, 256, %s25, [#allocation3], 64, 64, 4
    $region17: #{tpu_custom_call.1} parent=1 // pred_fallthru
      _
    // Predicated region
    $region18: #{tpu_custom_call.1} parent=1 // pred_check
      _
    $region19: #{tpu_custom_call.1} parent=1 // pred_check_branch
      %32 = sbr.rel (0) target = $region21
    $region20: #{tpu_custom_call.1} parent=1 // pred_region
      _
    $region21: #{tpu_custom_call.1} parent=1 // pred_fallthru
      _
    // Predicated region
    $region22: #{tpu_custom_call.1} parent=1 // pred_check
      _
    $region23: #{tpu_custom_call.1} parent=1 // pred_check_branch
      %34 = sbr.rel (0) target = $region25
    $region24: #{tpu_custom_call.1} parent=1 // pred_region
      _
    $region25: #{tpu_custom_call.1} parent=1 // pred_fallthru
      _
    // Predicated region
    $region26: #{tpu_custom_call.1} parent=1 // pred_check
      _
    $region27: #{tpu_custom_call.1} parent=1 // pred_check_branch
      %36 = sbr.rel (0) target = $region29
    $region28: #{tpu_custom_call.1} parent=1 // pred_region
      %37 = dma.done [#allocation3], 256
    $region29: #{tpu_custom_call.1} parent=1 // pred_fallthru
      _
    %v39 = vld [vmem:[%s0] sm:$0xff]
    %v40 = vld [vmem:[%s0 + $0x8] sm:$0xff]
    %v41 = vld [vmem:[%s5] sm:$0xff]
    %v42 = vpack.c.bf16 %v40, %v39
    %v43 = vld [vmem:[%s1] sm:$0xf]
    %v44 = vld [vmem:[%s1 + $0x4] sm:$0xf]
    %v45 = vld [vmem:[%s1 + $0x8] sm:$0xf]
    %v46 = vld [vmem:[%s1 + $0xc] sm:$0xf]
    %v47 = vlaneseq
    %v48 = vshrl.u32 %v47, 7
    %v49 = vsub.s32 0, %v48
    %v50 = vrot.slane %v41, %v49
    %v55 = vunpack.c.l.b16 %v43
    %v56 = vunpack.c.l.b16 %v44
    %v57 = vunpack.c.l.b16 %v45
    %v58 = vunpack.c.l.b16 %v46
    %v59 = vpack.c.b16 %v56, %v55
    %v60 = vpack.c.b16 %v58, %v57
    %vm63 = vcmask 261120
    %v65 = vsel %vm63, %v42, 0
    %67 = vmatprep.subr.bf16.mxu0 0
    %68 = vmatpush1.bf16.msra.mxu0 %v59
    %69 = vmatprep.subr.bf16.mxu0 0
    %70 = vmatpush1.bf16.msra.mxu0 %v60
    %71 = vmatprep.subr.bf16.mxu0 0
    %72 = vmatpush1.bf16.msra.mxu0 0
    %73 = vmatprep.subr.bf16.mxu0 0
    %74 = vmatpush1.bf16.msra.mxu0 0
    %75 = vmatprep.subr.bf16.mxu0 0
    %76 = vmatpush1.bf16.msra.mxu0 0
    %77 = vmatprep.subr.bf16.mxu0 0
    %78 = vmatpush1.bf16.msra.mxu0 0
    %79 = vmatprep.subr.bf16.mxu0 0
    %80 = vmatpush1.bf16.msra.mxu0 0
    %81 = vmatprep.subr.bf16.mxu0 0
    %82 = vmatpush1.bf16.msra.mxu0 0
    %83 = vmatprep.subr.bf16.mxu0 0
    %84 = vmatpush1.bf16.msra.mxu0 0
    %85 = vmatprep.subr.bf16.mxu0 0
    %86 = vmatpush1.bf16.msra.mxu0 0
    %87 = vmatprep.subr.bf16.mxu0 0
    %88 = vmatpush1.bf16.msra.mxu0 0
    %89 = vmatprep.subr.bf16.mxu0 0
    %90 = vmatpush1.bf16.msra.mxu0 0
    %91 = vmatprep.subr.bf16.mxu0 0
    %92 = vmatpush1.bf16.msra.mxu0 0
    %93 = vmatprep.subr.bf16.mxu0 0
    %94 = vmatpush1.bf16.msra.mxu0 0
    %95 = vmatprep.subr.bf16.mxu0 0
    %96 = vmatpush1.bf16.msra.mxu0 0
    %97 = vmatprep.subr.bf16.mxu0 0
    %98 = vmatpush1.bf16.msra.mxu0 0
    %99 = vmatprep.mubr.bf16.mxu0 0
    %100 = vmatmul.mubr.bf16.gmra.mrb[0].mxu0 %v65
    %v101 = vpop.f32.mrb[0].mxu0
    %v102 = vadd.f32 %v50, %v101
    %v103 = vpop.f32.mrb[0].mxu0
    %v104 = vpop.f32.mrb[0].mxu0
    %v105 = vadd.f32 %v50, %v104
    %v106 = vpop.f32.mrb[0].mxu0
    %107 = vdwg.mxu0
    %110 = vrot.lane.b32.xlu0 %v102, 120
    %v111 = vpop.permute.xlu0 %110
    %112 = vrot.lane.b32.xlu0 %v105, 120
    %v113 = vpop.permute.xlu0 %112
    %116 = vrot.lane.b32.xlu0 %v102, 112
    %v117 = vpop.permute.xlu0 %116
    %118 = vrot.lane.b32.xlu0 %v105, 112
    %v119 = vpop.permute.xlu0 %118
    %122 = vrot.lane.b32.xlu0 %v102, 104
    %v123 = vpop.permute.xlu0 %122
    %124 = vrot.lane.b32.xlu0 %v105, 104
    %v125 = vpop.permute.xlu0 %124
    %128 = vrot.lane.b32.xlu0 %v102, 96
    %v129 = vpop.permute.xlu0 %128
    %130 = vrot.lane.b32.xlu0 %v105, 96
    %v131 = vpop.permute.xlu0 %130
    %134 = vrot.lane.b32.xlu0 %v102, 88
    %v135 = vpop.permute.xlu0 %134
    %136 = vrot.lane.b32.xlu0 %v105, 88
    %v137 = vpop.permute.xlu0 %136
    %140 = vrot.lane.b32.xlu0 %v102, 80
    %v141 = vpop.permute.xlu0 %140
    %142 = vrot.lane.b32.xlu0 %v105, 80
    %v143 = vpop.permute.xlu0 %142
    %146 = vrot.lane.b32.xlu0 %v102, 72
    %v147 = vpop.permute.xlu0 %146
    %148 = vrot.lane.b32.xlu0 %v105, 72
    %v149 = vpop.permute.xlu0 %148
    %152 = vrot.lane.b32.xlu0 %v102, 64
    %v153 = vpop.permute.xlu0 %152
    %154 = vrot.lane.b32.xlu0 %v105, 64
    %v155 = vpop.permute.xlu0 %154
    %158 = vrot.lane.b32.xlu0 %v102, 56
    %v159 = vpop.permute.xlu0 %158
    %160 = vrot.lane.b32.xlu0 %v105, 56
    %v161 = vpop.permute.xlu0 %160
    %164 = vrot.lane.b32.xlu0 %v102, 48
    %v165 = vpop.permute.xlu0 %164
    %166 = vrot.lane.b32.xlu0 %v105, 48
    %v167 = vpop.permute.xlu0 %166
    %170 = vrot.lane.b32.xlu0 %v102, 40
    %v171 = vpop.permute.xlu0 %170
    %172 = vrot.lane.b32.xlu0 %v105, 40
    %v173 = vpop.permute.xlu0 %172
    %v176 = vcombine.low %v102, %v117
    %v177 = vcombine.high %v102, %v117
    %v179 = vunpack.c.l.s4 1983009808
    %v180 = vunpack.c.0.s8 %v179
    %v181 = vlaneseq
    %v182 = vshrl.u32 %v181, 7
    %v183 = vsub.s32 %v180, %v182
    %v184 = vrot.slane %v176, %v183
    %v186 = vunpack.c.l.s4 1983009808
    %v187 = vunpack.c.0.s8 %v186
    %v188 = vlaneseq
    %v189 = vshrl.u32 %v188, 7
    %v190 = vsub.s32 %v187, %v189
    %v191 = vrot.slane %v177, %v190
    %v192 = vcombine.low %v111, %v123
    %v193 = vcombine.high %v111, %v123
    %v195 = vunpack.c.l.s4 1983009808
    %v196 = vunpack.c.0.s8 %v195
    %v197 = vlaneseq
    %v198 = vshrl.u32 %v197, 7
    %v199 = vsub.s32 %v196, %v198
    %v200 = vrot.slane %v192, %v199
    %v202 = vunpack.c.l.s4 1983009808
    %v203 = vunpack.c.0.s8 %v202
    %v204 = vlaneseq
    %v205 = vshrl.u32 %v204, 7
    %v206 = vsub.s32 %v203, %v205
    %v207 = vrot.slane %v193, %v206
    %v208 = vcombine.low %v129, %v141
    %v209 = vcombine.high %v129, %v141
    %v211 = vunpack.c.l.s4 1983009808
    %v212 = vunpack.c.0.s8 %v211
    %v213 = vlaneseq
    %v214 = vshrl.u32 %v213, 7
    %v215 = vsub.s32 %v212, %v214
    %v216 = vrot.slane %v208, %v215
    %v218 = vunpack.c.l.s4 1983009808
    %v219 = vunpack.c.0.s8 %v218
    %v220 = vlaneseq
    %v221 = vshrl.u32 %v220, 7
    %v222 = vsub.s32 %v219, %v221
    %v223 = vrot.slane %v209, %v222
    %v224 = vcombine.low %v135, %v147
    %v225 = vcombine.high %v135, %v147
    %v227 = vunpack.c.l.s4 1983009808
    %v228 = vunpack.c.0.s8 %v227
    %v229 = vlaneseq
    %v230 = vshrl.u32 %v229, 7
    %v231 = vsub.s32 %v228, %v230
    %v232 = vrot.slane %v224, %v231
    %v234 = vunpack.c.l.s4 1983009808
    %v235 = vunpack.c.0.s8 %v234
    %v236 = vlaneseq
    %v237 = vshrl.u32 %v236, 7
    %v238 = vsub.s32 %v235, %v237
    %v239 = vrot.slane %v225, %v238
    %v240 = vcombine.low %v184, %v200
    %v241 = vcombine.high %v184, %v200
    %v243 = vunpack.c.l.s4 1934713408
    %v244 = vunpack.c.0.s8 %v243
    %v245 = vlaneseq
    %v246 = vshrl.u32 %v245, 7
    %v247 = vsub.s32 %v244, %v246
    %v248 = vrot.slane %v240, %v247
    %v250 = vunpack.c.l.s4 1934713408
    %v251 = vunpack.c.0.s8 %v250
    %v252 = vlaneseq
    %v253 = vshrl.u32 %v252, 7
    %v254 = vsub.s32 %v251, %v253
    %v255 = vrot.slane %v241, %v254
    %v256 = vcombine.low %v191, %v207
    %v257 = vcombine.high %v191, %v207
    %v259 = vunpack.c.l.s4 1934713408
    %v260 = vunpack.c.0.s8 %v259
    %v261 = vlaneseq
    %v262 = vshrl.u32 %v261, 7
    %v263 = vsub.s32 %v260, %v262
    %v264 = vrot.slane %v256, %v263
    %v266 = vunpack.c.l.s4 1934713408
    %v267 = vunpack.c.0.s8 %v266
    %v268 = vlaneseq
    %v269 = vshrl.u32 %v268, 7
    %v270 = vsub.s32 %v267, %v269
    %v271 = vrot.slane %v257, %v270
    %v272 = vcombine.low %v216, %v232
    %v273 = vcombine.high %v216, %v232
    %v275 = vunpack.c.l.s4 1934713408
    %v276 = vunpack.c.0.s8 %v275
    %v277 = vlaneseq
    %v278 = vshrl.u32 %v277, 7
    %v279 = vsub.s32 %v276, %v278
    %v280 = vrot.slane %v272, %v279
    %v282 = vunpack.c.l.s4 1934713408
    %v283 = vunpack.c.0.s8 %v282
    %v284 = vlaneseq
    %v285 = vshrl.u32 %v284, 7
    %v286 = vsub.s32 %v283, %v285
    %v287 = vrot.slane %v273, %v286
    %v288 = vcombine.low %v223, %v239
    %v289 = vcombine.high %v223, %v239
    %v291 = vunpack.c.l.s4 1934713408
    %v292 = vunpack.c.0.s8 %v291
    %v293 = vlaneseq
    %v294 = vshrl.u32 %v293, 7
    %v295 = vsub.s32 %v292, %v294
    %v296 = vrot.slane %v288, %v295
    %v298 = vunpack.c.l.s4 1934713408
    %v299 = vunpack.c.0.s8 %v298
    %v300 = vlaneseq
    %v301 = vshrl.u32 %v300, 7
    %v302 = vsub.s32 %v299, %v301
    %v303 = vrot.slane %v289, %v302
    %v304 = vcombine.low %v248, %v280
    %v305 = vcombine.high %v248, %v280
    %v306 = vcombine.low %v255, %v287
    %v307 = vcombine.high %v255, %v287
    %v308 = vcombine.low %v264, %v296
    %v309 = vcombine.high %v264, %v296
    %v310 = vcombine.low %v271, %v303
    %v311 = vcombine.high %v271, %v303
    %v312 = vcombine.low %v153, %v165
    %v313 = vcombine.high %v153, %v165
    %v315 = vunpack.c.l.s4 1983009808
    %v316 = vunpack.c.0.s8 %v315
    %v317 = vlaneseq
    %v318 = vshrl.u32 %v317, 7
    %v319 = vsub.s32 %v316, %v318
    %v320 = vrot.slane %v312, %v319
    %v322 = vunpack.c.l.s4 1983009808
    %v323 = vunpack.c.0.s8 %v322
    %v324 = vlaneseq
    %v325 = vshrl.u32 %v324, 7
    %v326 = vsub.s32 %v323, %v325
    %v327 = vrot.slane %v313, %v326
    %v328 = vcombine.low %v159, %v171
    %v329 = vcombine.high %v159, %v171
    %v331 = vunpack.c.l.s4 1983009808
    %v332 = vunpack.c.0.s8 %v331
    %v333 = vlaneseq
    %v334 = vshrl.u32 %v333, 7
    %v335 = vsub.s32 %v332, %v334
    %v336 = vrot.slane %v328, %v335
    %v338 = vunpack.c.l.s4 1983009808
    %v339 = vunpack.c.0.s8 %v338
    %v340 = vlaneseq
    %v341 = vshrl.u32 %v340, 7
    %v342 = vsub.s32 %v339, %v341
    %v343 = vrot.slane %v329, %v342
    %v344 = vcombine.low %v320, %v336
    %v345 = vcombine.high %v320, %v336
    %v347 = vunpack.c.l.s4 1934713408
    %v348 = vunpack.c.0.s8 %v347
    %v349 = vlaneseq
    %v350 = vshrl.u32 %v349, 7
    %v351 = vsub.s32 %v348, %v350
    %v352 = vrot.slane %v344, %v351
    %v354 = vunpack.c.l.s4 1934713408
    %v355 = vunpack.c.0.s8 %v354
    %v356 = vlaneseq
    %v357 = vshrl.u32 %v356, 7
    %v358 = vsub.s32 %v355, %v357
    %v359 = vrot.slane %v345, %v358
    %v360 = vcombine.low %v327, %v343
    %v361 = vcombine.high %v327, %v343
    %v363 = vunpack.c.l.s4 1934713408
    %v364 = vunpack.c.0.s8 %v363
    %v365 = vlaneseq
    %v366 = vshrl.u32 %v365, 7
    %v367 = vsub.s32 %v364, %v366
    %v368 = vrot.slane %v360, %v367
    %v370 = vunpack.c.l.s4 1934713408
    %v371 = vunpack.c.0.s8 %v370
    %v372 = vlaneseq
    %v373 = vshrl.u32 %v372, 7
    %v374 = vsub.s32 %v371, %v373
    %v375 = vrot.slane %v361, %v374
    %v376 = vcombine.high %v352, 0.0
    %v377 = vcombine.high %v359, 0.0
    %v378 = vcombine.high %v368, 0.0
    %v379 = vcombine.high %v375, 0.0
    %v380 = vcombine.low %v105, %v119
    %v381 = vcombine.high %v105, %v119
    %v383 = vunpack.c.l.s4 1983009808
    %v384 = vunpack.c.0.s8 %v383
    %v385 = vlaneseq
    %v386 = vshrl.u32 %v385, 7
    %v387 = vsub.s32 %v384, %v386
    %v388 = vrot.slane %v380, %v387
    %v390 = vunpack.c.l.s4 1983009808
    %v391 = vunpack.c.0.s8 %v390
    %v392 = vlaneseq
    %v393 = vshrl.u32 %v392, 7
    %v394 = vsub.s32 %v391, %v393
    %v395 = vrot.slane %v381, %v394
    %v396 = vcombine.low %v113, %v125
    %v397 = vcombine.high %v113, %v125
    %v399 = vunpack.c.l.s4 1983009808
    %v400 = vunpack.c.0.s8 %v399
    %v401 = vlaneseq
    %v402 = vshrl.u32 %v401, 7
    %v403 = vsub.s32 %v400, %v402
    %v404 = vrot.slane %v396, %v403
    %v406 = vunpack.c.l.s4 1983009808
    %v407 = vunpack.c.0.s8 %v406
    %v408 = vlaneseq
    %v409 = vshrl.u32 %v408, 7
    %v410 = vsub.s32 %v407, %v409
    %v411 = vrot.slane %v397, %v410
    %v412 = vcombine.low %v131, %v143
    %v413 = vcombine.high %v131, %v143
    %v415 = vunpack.c.l.s4 1983009808
    %v416 = vunpack.c.0.s8 %v415
    %v417 = vlaneseq
    %v418 = vshrl.u32 %v417, 7
    %v419 = vsub.s32 %v416, %v418
    %v420 = vrot.slane %v412, %v419
    %v422 = vunpack.c.l.s4 1983009808
    %v423 = vunpack.c.0.s8 %v422
    %v424 = vlaneseq
    %v425 = vshrl.u32 %v424, 7
    %v426 = vsub.s32 %v423, %v425
    %v427 = vrot.slane %v413, %v426
    %v428 = vcombine.low %v137, %v149
    %v429 = vcombine.high %v137, %v149
    %v431 = vunpack.c.l.s4 1983009808
    %v432 = vunpack.c.0.s8 %v431
    %v433 = vlaneseq
    %v434 = vshrl.u32 %v433, 7
    %v435 = vsub.s32 %v432, %v434
    %v436 = vrot.slane %v428, %v435
    %v438 = vunpack.c.l.s4 1983009808
    %v439 = vunpack.c.0.s8 %v438
    %v440 = vlaneseq
    %v441 = vshrl.u32 %v440, 7
    %v442 = vsub.s32 %v439, %v441
    %v443 = vrot.slane %v429, %v442
    %v444 = vcombine.low %v388, %v404
    %v445 = vcombine.high %v388, %v404
    %v447 = vunpack.c.l.s4 1934713408
    %v448 = vunpack.c.0.s8 %v447
    %v449 = vlaneseq
    %v450 = vshrl.u32 %v449, 7
    %v451 = vsub.s32 %v448, %v450
    %v452 = vrot.slane %v444, %v451
    %v454 = vunpack.c.l.s4 1934713408
    %v455 = vunpack.c.0.s8 %v454
    %v456 = vlaneseq
    %v457 = vshrl.u32 %v456, 7
    %v458 = vsub.s32 %v455, %v457
    %v459 = vrot.slane %v445, %v458
    %v460 = vcombine.low %v395, %v411
    %v461 = vcombine.high %v395, %v411
    %v463 = vunpack.c.l.s4 1934713408
    %v464 = vunpack.c.0.s8 %v463
    %v465 = vlaneseq
    %v466 = vshrl.u32 %v465, 7
    %v467 = vsub.s32 %v464, %v466
    %v468 = vrot.slane %v460, %v467
    %v470 = vunpack.c.l.s4 1934713408
    %v471 = vunpack.c.0.s8 %v470
    %v472 = vlaneseq
    %v473 = vshrl.u32 %v472, 7
    %v474 = vsub.s32 %v471, %v473
    %v475 = vrot.slane %v461, %v474
    %v476 = vcombine.low %v420, %v436
    %v477 = vcombine.high %v420, %v436
    %v479 = vunpack.c.l.s4 1934713408
    %v480 = vunpack.c.0.s8 %v479
    %v481 = vlaneseq
    %v482 = vshrl.u32 %v481, 7
    %v483 = vsub.s32 %v480, %v482
    %v484 = vrot.slane %v476, %v483
    %v486 = vunpack.c.l.s4 1934713408
    %v487 = vunpack.c.0.s8 %v486
    %v488 = vlaneseq
    %v489 = vshrl.u32 %v488, 7
    %v490 = vsub.s32 %v487, %v489
    %v491 = vrot.slane %v477, %v490
    %v492 = vcombine.low %v427, %v443
    %v493 = vcombine.high %v427, %v443
    %v495 = vunpack.c.l.s4 1934713408
    %v496 = vunpack.c.0.s8 %v495
    %v497 = vlaneseq
    %v498 = vshrl.u32 %v497, 7
    %v499 = vsub.s32 %v496, %v498
    %v500 = vrot.slane %v492, %v499
    %v502 = vunpack.c.l.s4 1934713408
    %v503 = vunpack.c.0.s8 %v502
    %v504 = vlaneseq
    %v505 = vshrl.u32 %v504, 7
    %v506 = vsub.s32 %v503, %v505
    %v507 = vrot.slane %v493, %v506
    %v508 = vcombine.low %v452, %v484
    %v509 = vcombine.high %v452, %v484
    %v510 = vcombine.low %v459, %v491
    %v511 = vcombine.high %v459, %v491
    %v512 = vcombine.low %v468, %v500
    %v513 = vcombine.high %v468, %v500
    %v514 = vcombine.low %v475, %v507
    %v515 = vcombine.high %v475, %v507
    %v516 = vcombine.low %v155, %v167
    %v517 = vcombine.high %v155, %v167
    %v519 = vunpack.c.l.s4 1983009808
    %v520 = vunpack.c.0.s8 %v519
    %v521 = vlaneseq
    %v522 = vshrl.u32 %v521, 7
    %v523 = vsub.s32 %v520, %v522
    %v524 = vrot.slane %v516, %v523
    %v526 = vunpack.c.l.s4 1983009808
    %v527 = vunpack.c.0.s8 %v526
    %v528 = vlaneseq
    %v529 = vshrl.u32 %v528, 7
    %v530 = vsub.s32 %v527, %v529
    %v531 = vrot.slane %v517, %v530
    %v532 = vcombine.low %v161, %v173
    %v533 = vcombine.high %v161, %v173
    %v535 = vunpack.c.l.s4 1983009808
    %v536 = vunpack.c.0.s8 %v535
    %v537 = vlaneseq
    %v538 = vshrl.u32 %v537, 7
    %v539 = vsub.s32 %v536, %v538
    %v540 = vrot.slane %v532, %v539
    %v542 = vunpack.c.l.s4 1983009808
    %v543 = vunpack.c.0.s8 %v542
    %v544 = vlaneseq
    %v545 = vshrl.u32 %v544, 7
    %v546 = vsub.s32 %v543, %v545
    %v547 = vrot.slane %v533, %v546
    %v548 = vcombine.low %v524, %v540
    %v549 = vcombine.high %v524, %v540
    %v551 = vunpack.c.l.s4 1934713408
    %v552 = vunpack.c.0.s8 %v551
    %v553 = vlaneseq
    %v554 = vshrl.u32 %v553, 7
    %v555 = vsub.s32 %v552, %v554
    %v556 = vrot.slane %v548, %v555
    %v558 = vunpack.c.l.s4 1934713408
    %v559 = vunpack.c.0.s8 %v558
    %v560 = vlaneseq
    %v561 = vshrl.u32 %v560, 7
    %v562 = vsub.s32 %v559, %v561
    %v563 = vrot.slane %v549, %v562
    %v564 = vcombine.low %v531, %v547
    %v565 = vcombine.high %v531, %v547
    %v567 = vunpack.c.l.s4 1934713408
    %v568 = vunpack.c.0.s8 %v567
    %v569 = vlaneseq
    %v570 = vshrl.u32 %v569, 7
    %v571 = vsub.s32 %v568, %v570
    %v572 = vrot.slane %v564, %v571
    %v574 = vunpack.c.l.s4 1934713408
    %v575 = vunpack.c.0.s8 %v574
    %v576 = vlaneseq
    %v577 = vshrl.u32 %v576, 7
    %v578 = vsub.s32 %v575, %v577
    %v579 = vrot.slane %v565, %v578
    %v580 = vcombine.high %v556, 0.0
    %v581 = vcombine.high %v563, 0.0
    %v582 = vcombine.high %v572, 0.0
    %v583 = vcombine.high %v579, 0.0
    %v584 = vcombine.low %v304, %v306
    %v585 = vcombine.high %v304, %v306
    %v587 = vunpack.c.l.s4 1983009808
    %v588 = vunpack.c.0.s8 %v587
    %v589 = vlaneseq
    %v590 = vshrl.u32 %v589, 7
    %v591 = vsub.s32 %v588, %v590
    %v592 = vrot.slane %v584, %v591
    %v594 = vunpack.c.l.s4 1983009808
    %v595 = vunpack.c.0.s8 %v594
    %v596 = vlaneseq
    %v597 = vshrl.u32 %v596, 7
    %v598 = vsub.s32 %v595, %v597
    %v599 = vrot.slane %v585, %v598
    %v600 = vcombine.low %v305, %v307
    %v601 = vcombine.high %v305, %v307
    %v603 = vunpack.c.l.s4 1983009808
    %v604 = vunpack.c.0.s8 %v603
    %v605 = vlaneseq
    %v606 = vshrl.u32 %v605, 7
    %v607 = vsub.s32 %v604, %v606
    %v608 = vrot.slane %v600, %v607
    %v610 = vunpack.c.l.s4 1983009808
    %v611 = vunpack.c.0.s8 %v610
    %v612 = vlaneseq
    %v613 = vshrl.u32 %v612, 7
    %v614 = vsub.s32 %v611, %v613
    %v615 = vrot.slane %v601, %v614
    %v616 = vcombine.low %v308, %v310
    %v617 = vcombine.high %v308, %v310
    %v619 = vunpack.c.l.s4 1983009808
    %v620 = vunpack.c.0.s8 %v619
    %v621 = vlaneseq
    %v622 = vshrl.u32 %v621, 7
    %v623 = vsub.s32 %v620, %v622
    %v624 = vrot.slane %v616, %v623
    %v626 = vunpack.c.l.s4 1983009808
    %v627 = vunpack.c.0.s8 %v626
    %v628 = vlaneseq
    %v629 = vshrl.u32 %v628, 7
    %v630 = vsub.s32 %v627, %v629
    %v631 = vrot.slane %v617, %v630
    %v632 = vcombine.low %v309, %v311
    %v633 = vcombine.high %v309, %v311
    %v635 = vunpack.c.l.s4 1983009808
    %v636 = vunpack.c.0.s8 %v635
    %v637 = vlaneseq
    %v638 = vshrl.u32 %v637, 7
    %v639 = vsub.s32 %v636, %v638
    %v640 = vrot.slane %v632, %v639
    %v642 = vunpack.c.l.s4 1983009808
    %v643 = vunpack.c.0.s8 %v642
    %v644 = vlaneseq
    %v645 = vshrl.u32 %v644, 7
    %v646 = vsub.s32 %v643, %v645
    %v647 = vrot.slane %v633, %v646
    %v648 = vcombine.low %v592, %v608
    %v649 = vcombine.high %v592, %v608
    %v651 = vunpack.c.l.s4 1934713408
    %v652 = vunpack.c.0.s8 %v651
    %v653 = vlaneseq
    %v654 = vshrl.u32 %v653, 7
    %v655 = vsub.s32 %v652, %v654
    %v656 = vrot.slane %v648, %v655
    %v658 = vunpack.c.l.s4 1934713408
    %v659 = vunpack.c.0.s8 %v658
    %v660 = vlaneseq
    %v661 = vshrl.u32 %v660, 7
    %v662 = vsub.s32 %v659, %v661
    %v663 = vrot.slane %v649, %v662
    %v664 = vcombine.low %v599, %v615
    %v665 = vcombine.high %v599, %v615
    %v667 = vunpack.c.l.s4 1934713408
    %v668 = vunpack.c.0.s8 %v667
    %v669 = vlaneseq
    %v670 = vshrl.u32 %v669, 7
    %v671 = vsub.s32 %v668, %v670
    %v672 = vrot.slane %v664, %v671
    %v674 = vunpack.c.l.s4 1934713408
    %v675 = vunpack.c.0.s8 %v674
    %v676 = vlaneseq
    %v677 = vshrl.u32 %v676, 7
    %v678 = vsub.s32 %v675, %v677
    %v679 = vrot.slane %v665, %v678
    %v680 = vcombine.low %v624, %v640
    %v681 = vcombine.high %v624, %v640
    %v683 = vunpack.c.l.s4 1934713408
    %v684 = vunpack.c.0.s8 %v683
    %v685 = vlaneseq
    %v686 = vshrl.u32 %v685, 7
    %v687 = vsub.s32 %v684, %v686
    %v688 = vrot.slane %v680, %v687
    %v690 = vunpack.c.l.s4 1934713408
    %v691 = vunpack.c.0.s8 %v690
    %v692 = vlaneseq
    %v693 = vshrl.u32 %v692, 7
    %v694 = vsub.s32 %v691, %v693
    %v695 = vrot.slane %v681, %v694
    %v696 = vcombine.low %v631, %v647
    %v697 = vcombine.high %v631, %v647
    %v699 = vunpack.c.l.s4 1934713408
    %v700 = vunpack.c.0.s8 %v699
    %v701 = vlaneseq
    %v702 = vshrl.u32 %v701, 7
    %v703 = vsub.s32 %v700, %v702
    %v704 = vrot.slane %v696, %v703
    %v706 = vunpack.c.l.s4 1934713408
    %v707 = vunpack.c.0.s8 %v706
    %v708 = vlaneseq
    %v709 = vshrl.u32 %v708, 7
    %v710 = vsub.s32 %v707, %v709
    %v711 = vrot.slane %v697, %v710
    %v712 = vcombine.low %v656, %v688
    %v713 = vcombine.high %v656, %v688
    %v714 = vcombine.low %v663, %v695
    %v715 = vcombine.high %v663, %v695
    %v716 = vcombine.low %v672, %v704
    %v717 = vcombine.high %v672, %v704
    %v718 = vcombine.low %v679, %v711
    %v719 = vcombine.high %v679, %v711
    %v720 = vcombine.low %v508, %v510
    %v721 = vcombine.high %v508, %v510
    %v723 = vunpack.c.l.s4 1983009808
    %v724 = vunpack.c.0.s8 %v723
    %v725 = vlaneseq
    %v726 = vshrl.u32 %v725, 7
    %v727 = vsub.s32 %v724, %v726
    %v728 = vrot.slane %v720, %v727
    %v730 = vunpack.c.l.s4 1983009808
    %v731 = vunpack.c.0.s8 %v730
    %v732 = vlaneseq
    %v733 = vshrl.u32 %v732, 7
    %v734 = vsub.s32 %v731, %v733
    %v735 = vrot.slane %v721, %v734
    %v736 = vcombine.low %v509, %v511
    %v737 = vcombine.high %v509, %v511
    %v739 = vunpack.c.l.s4 1983009808
    %v740 = vunpack.c.0.s8 %v739
    %v741 = vlaneseq
    %v742 = vshrl.u32 %v741, 7
    %v743 = vsub.s32 %v740, %v742
    %v744 = vrot.slane %v736, %v743
    %v746 = vunpack.c.l.s4 1983009808
    %v747 = vunpack.c.0.s8 %v746
    %v748 = vlaneseq
    %v749 = vshrl.u32 %v748, 7
    %v750 = vsub.s32 %v747, %v749
    %v751 = vrot.slane %v737, %v750
    %v752 = vcombine.low %v512, %v514
    %v753 = vcombine.high %v512, %v514
    %v755 = vunpack.c.l.s4 1983009808
    %v756 = vunpack.c.0.s8 %v755
    %v757 = vlaneseq
    %v758 = vshrl.u32 %v757, 7
    %v759 = vsub.s32 %v756, %v758
    %v760 = vrot.slane %v752, %v759
    %v762 = vunpack.c.l.s4 1983009808
    %v763 = vunpack.c.0.s8 %v762
    %v764 = vlaneseq
    %v765 = vshrl.u32 %v764, 7
    %v766 = vsub.s32 %v763, %v765
    %v767 = vrot.slane %v753, %v766
    %v768 = vcombine.low %v513, %v515
    %v769 = vcombine.high %v513, %v515
    %v771 = vunpack.c.l.s4 1983009808
    %v772 = vunpack.c.0.s8 %v771
    %v773 = vlaneseq
    %v774 = vshrl.u32 %v773, 7
    %v775 = vsub.s32 %v772, %v774
    %v776 = vrot.slane %v768, %v775
    %v778 = vunpack.c.l.s4 1983009808
    %v779 = vunpack.c.0.s8 %v778
    %v780 = vlaneseq
    %v781 = vshrl.u32 %v780, 7
    %v782 = vsub.s32 %v779, %v781
    %v783 = vrot.slane %v769, %v782
    %v784 = vcombine.low %v728, %v744
    %v785 = vcombine.high %v728, %v744
    %v787 = vunpack.c.l.s4 1934713408
    %v788 = vunpack.c.0.s8 %v787
    %v789 = vlaneseq
    %v790 = vshrl.u32 %v789, 7
    %v791 = vsub.s32 %v788, %v790
    %v792 = vrot.slane %v784, %v791
    %v794 = vunpack.c.l.s4 1934713408
    %v795 = vunpack.c.0.s8 %v794
    %v796 = vlaneseq
    %v797 = vshrl.u32 %v796, 7
    %v798 = vsub.s32 %v795, %v797
    %v799 = vrot.slane %v785, %v798
    %v800 = vcombine.low %v735, %v751
    %v801 = vcombine.high %v735, %v751
    %v803 = vunpack.c.l.s4 1934713408
    %v804 = vunpack.c.0.s8 %v803
    %v805 = vlaneseq
    %v806 = vshrl.u32 %v805, 7
    %v807 = vsub.s32 %v804, %v806
    %v808 = vrot.slane %v800, %v807
    %v810 = vunpack.c.l.s4 1934713408
    %v811 = vunpack.c.0.s8 %v810
    %v812 = vlaneseq
    %v813 = vshrl.u32 %v812, 7
    %v814 = vsub.s32 %v811, %v813
    %v815 = vrot.slane %v801, %v814
    %v816 = vcombine.low %v760, %v776
    %v817 = vcombine.high %v760, %v776
    %v819 = vunpack.c.l.s4 1934713408
    %v820 = vunpack.c.0.s8 %v819
    %v821 = vlaneseq
    %v822 = vshrl.u32 %v821, 7
    %v823 = vsub.s32 %v820, %v822
    %v824 = vrot.slane %v816, %v823
    %v826 = vunpack.c.l.s4 1934713408
    %v827 = vunpack.c.0.s8 %v826
    %v828 = vlaneseq
    %v829 = vshrl.u32 %v828, 7
    %v830 = vsub.s32 %v827, %v829
    %v831 = vrot.slane %v817, %v830
    %v832 = vcombine.low %v767, %v783
    %v833 = vcombine.high %v767, %v783
    %v835 = vunpack.c.l.s4 1934713408
    %v836 = vunpack.c.0.s8 %v835
    %v837 = vlaneseq
    %v838 = vshrl.u32 %v837, 7
    %v839 = vsub.s32 %v836, %v838
    %v840 = vrot.slane %v832, %v839
    %v842 = vunpack.c.l.s4 1934713408
    %v843 = vunpack.c.0.s8 %v842
    %v844 = vlaneseq
    %v845 = vshrl.u32 %v844, 7
    %v846 = vsub.s32 %v843, %v845
    %v847 = vrot.slane %v833, %v846
    %v848 = vcombine.low %v792, %v824
    %v849 = vcombine.high %v792, %v824
    %v850 = vcombine.low %v799, %v831
    %v851 = vcombine.high %v799, %v831
    %v852 = vcombine.low %v808, %v840
    %v853 = vcombine.high %v808, %v840
    %v854 = vcombine.low %v815, %v847
    %v855 = vcombine.high %v815, %v847
    %v856 = vcombine.low %v352, %v359
    %v858 = vunpack.c.l.s4 1983009808
    %v859 = vunpack.c.0.s8 %v858
    %v860 = vlaneseq
    %v861 = vshrl.u32 %v860, 7
    %v862 = vsub.s32 %v859, %v861
    %v863 = vrot.slane %v856, %v862
    %v864 = vcombine.low %v376, %v377
    %v866 = vunpack.c.l.s4 1983009808
    %v867 = vunpack.c.0.s8 %v866
    %v868 = vlaneseq
    %v869 = vshrl.u32 %v868, 7
    %v870 = vsub.s32 %v867, %v869
    %v871 = vrot.slane %v864, %v870
    %v872 = vcombine.low %v368, %v375
    %v874 = vunpack.c.l.s4 1983009808
    %v875 = vunpack.c.0.s8 %v874
    %v876 = vlaneseq
    %v877 = vshrl.u32 %v876, 7
    %v878 = vsub.s32 %v875, %v877
    %v879 = vrot.slane %v872, %v878
    %v880 = vcombine.low %v378, %v379
    %v882 = vunpack.c.l.s4 1983009808
    %v883 = vunpack.c.0.s8 %v882
    %v884 = vlaneseq
    %v885 = vshrl.u32 %v884, 7
    %v886 = vsub.s32 %v883, %v885
    %v887 = vrot.slane %v880, %v886
    %v888 = vcombine.low %v863, %v871
    %v889 = vcombine.high %v863, %v871
    %v891 = vunpack.c.l.s4 1934713408
    %v892 = vunpack.c.0.s8 %v891
    %v893 = vlaneseq
    %v894 = vshrl.u32 %v893, 7
    %v895 = vsub.s32 %v892, %v894
    %v896 = vrot.slane %v888, %v895
    %v898 = vunpack.c.l.s4 1934713408
    %v899 = vunpack.c.0.s8 %v898
    %v900 = vlaneseq
    %v901 = vshrl.u32 %v900, 7
    %v902 = vsub.s32 %v899, %v901
    %v903 = vrot.slane %v889, %v902
    %v904 = vcombine.low %v879, %v887
    %v905 = vcombine.high %v879, %v887
    %v907 = vunpack.c.l.s4 1934713408
    %v908 = vunpack.c.0.s8 %v907
    %v909 = vlaneseq
    %v910 = vshrl.u32 %v909, 7
    %v911 = vsub.s32 %v908, %v910
    %v912 = vrot.slane %v904, %v911
    %v914 = vunpack.c.l.s4 1934713408
    %v915 = vunpack.c.0.s8 %v914
    %v916 = vlaneseq
    %v917 = vshrl.u32 %v916, 7
    %v918 = vsub.s32 %v915, %v917
    %v919 = vrot.slane %v905, %v918
    %v920 = vcombine.low %v896, %v912
    %v921 = vcombine.high %v896, %v912
    %v922 = vcombine.low %v903, %v919
    %v923 = vcombine.high %v903, %v919
    %v924 = vcombine.low %v556, %v563
    %v926 = vunpack.c.l.s4 1983009808
    %v927 = vunpack.c.0.s8 %v926
    %v928 = vlaneseq
    %v929 = vshrl.u32 %v928, 7
    %v930 = vsub.s32 %v927, %v929
    %v931 = vrot.slane %v924, %v930
    %v932 = vcombine.low %v580, %v581
    %v934 = vunpack.c.l.s4 1983009808
    %v935 = vunpack.c.0.s8 %v934
    %v936 = vlaneseq
    %v937 = vshrl.u32 %v936, 7
    %v938 = vsub.s32 %v935, %v937
    %v939 = vrot.slane %v932, %v938
    %v940 = vcombine.low %v572, %v579
    %v942 = vunpack.c.l.s4 1983009808
    %v943 = vunpack.c.0.s8 %v942
    %v944 = vlaneseq
    %v945 = vshrl.u32 %v944, 7
    %v946 = vsub.s32 %v943, %v945
    %v947 = vrot.slane %v940, %v946
    %v948 = vcombine.low %v582, %v583
    %v950 = vunpack.c.l.s4 1983009808
    %v951 = vunpack.c.0.s8 %v950
    %v952 = vlaneseq
    %v953 = vshrl.u32 %v952, 7
    %v954 = vsub.s32 %v951, %v953
    %v955 = vrot.slane %v948, %v954
    %v956 = vcombine.low %v931, %v939
    %v957 = vcombine.high %v931, %v939
    %v959 = vunpack.c.l.s4 1934713408
    %v960 = vunpack.c.0.s8 %v959
    %v961 = vlaneseq
    %v962 = vshrl.u32 %v961, 7
    %v963 = vsub.s32 %v960, %v962
    %v964 = vrot.slane %v956, %v963
    %v966 = vunpack.c.l.s4 1934713408
    %v967 = vunpack.c.0.s8 %v966
    %v968 = vlaneseq
    %v969 = vshrl.u32 %v968, 7
    %v970 = vsub.s32 %v967, %v969
    %v971 = vrot.slane %v957, %v970
    %v972 = vcombine.low %v947, %v955
    %v973 = vcombine.high %v947, %v955
    %v975 = vunpack.c.l.s4 1934713408
    %v976 = vunpack.c.0.s8 %v975
    %v977 = vlaneseq
    %v978 = vshrl.u32 %v977, 7
    %v979 = vsub.s32 %v976, %v978
    %v980 = vrot.slane %v972, %v979
    %v982 = vunpack.c.l.s4 1934713408
    %v983 = vunpack.c.0.s8 %v982
    %v984 = vlaneseq
    %v985 = vshrl.u32 %v984, 7
    %v986 = vsub.s32 %v983, %v985
    %v987 = vrot.slane %v973, %v986
    %v988 = vcombine.low %v964, %v980
    %v989 = vcombine.high %v964, %v980
    %v990 = vcombine.low %v971, %v987
    %v991 = vcombine.high %v971, %v987
    %v992 = vpack.c.bf16 %v848, %v712
    %v993 = vpack.c.bf16 %v849, %v713
    %v994 = vpack.c.bf16 %v850, %v714
    %v995 = vpack.c.bf16 %v851, %v715
    %v996 = vpack.c.bf16 %v852, %v716
    %v997 = vpack.c.bf16 %v853, %v717
    %v998 = vpack.c.bf16 %v854, %v718
    %v999 = vpack.c.bf16 %v855, %v719
    %v1000 = vlaneseq
    %v1001 = vshrl.u32 %v1000, 7
    %v1002 = vadd.s32 %v1001, 8
    %v1003 = vlaneseq
    %v1004 = vand.u32 %v1003, 127
    %v1005 = vshra.s32 %v1001, 3
    %v1006 = vshra.s32 %v1002, 3
    %v1007 = vshra.s32 %v1004, 3
    %vm1008 = vcmp.eq.s32.totalorder %v1005, %v1007
    %vm1009 = vcmp.eq.s32.totalorder %v1006, %v1007
    %v1010 = vsel %vm1008, 0.0, -1e+30
    %v1011 = vsel %vm1009, 0.0, -1e+30
    %vm1012 = vcmask 64512
    %v1014 = vsel %vm1012, %v992, 0
    %v1017 = vsel %vm1012, %v996, 0
    %1019 = vmatprep.subr.bf16.mxu0 0
    %1020 = vmatpush1.bf16.xpose.msra.mxu0 %v1017
    %1021 = vmatprep.subr.bf16.mxu0 0
    %1022 = vmatpush1.bf16.xpose.msra.mxu0 0
    %1023 = vmatprep.subr.bf16.mxu0 0
    %1024 = vmatpush1.bf16.xpose.msra.mxu0 0
    %1025 = vmatprep.subr.bf16.mxu0 0
    %1026 = vmatpush1.bf16.xpose.msra.mxu0 0
    %1027 = vmatprep.subr.bf16.mxu0 0
    %1028 = vmatpush1.bf16.xpose.msra.mxu0 0
    %1029 = vmatprep.subr.bf16.mxu0 0
    %1030 = vmatpush1.bf16.xpose.msra.mxu0 0
    %1031 = vmatprep.subr.bf16.mxu0 0
    %1032 = vmatpush1.bf16.xpose.msra.mxu0 0
    %1033 = vmatprep.subr.bf16.mxu0 0
    %1034 = vmatpush1.bf16.xpose.msra.mxu0 0
    %1035 = vmatprep.subr.bf16.mxu0 0
    %1036 = vmatpush1.bf16.xpose.msra.mxu0 0
    %1037 = vmatprep.subr.bf16.mxu0 0
    %1038 = vmatpush1.bf16.xpose.msra.mxu0 0
    %1039 = vmatprep.subr.bf16.mxu0 0
    %1040 = vmatpush1.bf16.xpose.msra.mxu0 0
    %1041 = vmatprep.subr.bf16.mxu0 0
    %1042 = vmatpush1.bf16.xpose.msra.mxu0 0
    %1043 = vmatprep.subr.bf16.mxu0 0
    %1044 = vmatpush1.bf16.xpose.msra.mxu0 0
    %1045 = vmatprep.subr.bf16.mxu0 0
    %1046 = vmatpush1.bf16.xpose.msra.mxu0 0
    %1047 = vmatprep.subr.bf16.mxu0 0
    %1048 = vmatpush1.bf16.xpose.msra.mxu0 0
    %1049 = vmatprep.subr.bf16.mxu0 0
    %1050 = vmatpush1.bf16.xpose.msra.mxu0 0
    %1051 = vmatprep.mubr.bf16.mxu0 0
    %1052 = vmatmul.mubr.bf16.gmra.mrb[0].mxu0 %v1014
    %v1053 = vpop.f32.mrb[0].mxu0
    %v1054 = vadd.f32 %v1010, %v1053
    %v1055 = vpop.f32.mrb[0].mxu0
    %v1056 = vpop.f32.mrb[0].mxu0
    %v1057 = vadd.f32 %v1011, %v1056
    %v1058 = vpop.f32.mrb[0].mxu0
    %1059 = vdwg.mxu0
    %v1061 = vsel %vm1012, %v993, 0
    %v1064 = vsel %vm1012, %v997, 0
    %1066 = vmatprep.subr.bf16.mxu0 0
    %1067 = vmatpush1.bf16.xpose.msra.mxu0 %v1064
    %1068 = vmatprep.subr.bf16.mxu0 0
    %1069 = vmatpush1.bf16.xpose.msra.mxu0 0
    %1070 = vmatprep.subr.bf16.mxu0 0
    %1071 = vmatpush1.bf16.xpose.msra.mxu0 0
    %1072 = vmatprep.subr.bf16.mxu0 0
    %1073 = vmatpush1.bf16.xpose.msra.mxu0 0
    %1074 = vmatprep.subr.bf16.mxu0 0
    %1075 = vmatpush1.bf16.xpose.msra.mxu0 0
    %1076 = vmatprep.subr.bf16.mxu0 0
    %1077 = vmatpush1.bf16.xpose.msra.mxu0 0
    %1078 = vmatprep.subr.bf16.mxu0 0
    %1079 = vmatpush1.bf16.xpose.msra.mxu0 0
    %1080 = vmatprep.subr.bf16.mxu0 0
    %1081 = vmatpush1.bf16.xpose.msra.mxu0 0
    %1082 = vmatprep.subr.bf16.mxu0 0
    %1083 = vmatpush1.bf16.xpose.msra.mxu0 0
    %1084 = vmatprep.subr.bf16.mxu0 0
    %1085 = vmatpush1.bf16.xpose.msra.mxu0 0
    %1086 = vmatprep.subr.bf16.mxu0 0
    %1087 = vmatpush1.bf16.xpose.msra.mxu0 0
    %1088 = vmatprep.subr.bf16.mxu0 0
    %1089 = vmatpush1.bf16.xpose.msra.mxu0 0
    %1090 = vmatprep.subr.bf16.mxu0 0
    %1091 = vmatpush1.bf16.xpose.msra.mxu0 0
    %1092 = vmatprep.subr.bf16.mxu0 0
    %1093 = vmatpush1.bf16.xpose.msra.mxu0 0
    %1094 = vmatprep.subr.bf16.mxu0 0
    %1095 = vmatpush1.bf16.xpose.msra.mxu0 0
    %1096 = vmatprep.subr.bf16.mxu0 0
    %1097 = vmatpush1.bf16.xpose.msra.mxu0 0
    %1098 = vmatprep.mubr.bf16.mxu0 0
    %1099 = vmatmul.mubr.bf16.gmra.mrb[0].mxu0 %v1061
    %v1100 = vpop.f32.mrb[0].mxu0
    %v1101 = vadd.f32 %v1010, %v1100
    %v1102 = vpop.f32.mrb[0].mxu0
    %v1103 = vpop.f32.mrb[0].mxu0
    %v1104 = vadd.f32 %v1011, %v1103
    %v1105 = vpop.f32.mrb[0].mxu0
    %1106 = vdwg.mxu0
    %v1108 = vsel %vm1012, %v994, 0
    %v1111 = vsel %vm1012, %v998, 0
    %1113 = vmatprep.subr.bf16.mxu0 0
    %1114 = vmatpush1.bf16.xpose.msra.mxu0 %v1111
    %1115 = vmatprep.subr.bf16.mxu0 0
    %1116 = vmatpush1.bf16.xpose.msra.mxu0 0
    %1117 = vmatprep.subr.bf16.mxu0 0
    %1118 = vmatpush1.bf16.xpose.msra.mxu0 0
    %1119 = vmatprep.subr.bf16.mxu0 0
    %1120 = vmatpush1.bf16.xpose.msra.mxu0 0
    %1121 = vmatprep.subr.bf16.mxu0 0
    %1122 = vmatpush1.bf16.xpose.msra.mxu0 0
    %1123 = vmatprep.subr.bf16.mxu0 0
    %1124 = vmatpush1.bf16.xpose.msra.mxu0 0
    %1125 = vmatprep.subr.bf16.mxu0 0
    %1126 = vmatpush1.bf16.xpose.msra.mxu0 0
    %1127 = vmatprep.subr.bf16.mxu0 0
    %1128 = vmatpush1.bf16.xpose.msra.mxu0 0
    %1129 = vmatprep.subr.bf16.mxu0 0
    %1130 = vmatpush1.bf16.xpose.msra.mxu0 0
    %1131 = vmatprep.subr.bf16.mxu0 0
    %1132 = vmatpush1.bf16.xpose.msra.mxu0 0
    %1133 = vmatprep.subr.bf16.mxu0 0
    %1134 = vmatpush1.bf16.xpose.msra.mxu0 0
    %1135 = vmatprep.subr.bf16.mxu0 0
    %1136 = vmatpush1.bf16.xpose.msra.mxu0 0
    %1137 = vmatprep.subr.bf16.mxu0 0
    %1138 = vmatpush1.bf16.xpose.msra.mxu0 0
    %1139 = vmatprep.subr.bf16.mxu0 0
    %1140 = vmatpush1.bf16.xpose.msra.mxu0 0
    %1141 = vmatprep.subr.bf16.mxu0 0
    %1142 = vmatpush1.bf16.xpose.msra.mxu0 0
    %1143 = vmatprep.subr.bf16.mxu0 0
    %1144 = vmatpush1.bf16.xpose.msra.mxu0 0
    %1145 = vmatprep.mubr.bf16.mxu0 0
    %1146 = vmatmul.mubr.bf16.gmra.mrb[0].mxu0 %v1108
    %v1147 = vpop.f32.mrb[0].mxu0
    %v1148 = vadd.f32 %v1010, %v1147
    %v1149 = vpop.f32.mrb[0].mxu0
    %v1150 = vpop.f32.mrb[0].mxu0
    %v1151 = vadd.f32 %v1011, %v1150
    %v1152 = vpop.f32.mrb[0].mxu0
    %1153 = vdwg.mxu0
    %v1155 = vsel %vm1012, %v995, 0
    %v1158 = vsel %vm1012, %v999, 0
    %1160 = vmatprep.subr.bf16.mxu0 0
    %1161 = vmatpush1.bf16.xpose.msra.mxu0 %v1158
    %1162 = vmatprep.subr.bf16.mxu0 0
    %1163 = vmatpush1.bf16.xpose.msra.mxu0 0
    %1164 = vmatprep.subr.bf16.mxu0 0
    %1165 = vmatpush1.bf16.xpose.msra.mxu0 0
    %1166 = vmatprep.subr.bf16.mxu0 0
    %1167 = vmatpush1.bf16.xpose.msra.mxu0 0
    %1168 = vmatprep.subr.bf16.mxu0 0
    %1169 = vmatpush1.bf16.xpose.msra.mxu0 0
    %1170 = vmatprep.subr.bf16.mxu0 0
    %1171 = vmatpush1.bf16.xpose.msra.mxu0 0
    %1172 = vmatprep.subr.bf16.mxu0 0
    %1173 = vmatpush1.bf16.xpose.msra.mxu0 0
    %1174 = vmatprep.subr.bf16.mxu0 0
    %1175 = vmatpush1.bf16.xpose.msra.mxu0 0
    %1176 = vmatprep.subr.bf16.mxu0 0
    %1177 = vmatpush1.bf16.xpose.msra.mxu0 0
    %1178 = vmatprep.subr.bf16.mxu0 0
    %1179 = vmatpush1.bf16.xpose.msra.mxu0 0
    %1180 = vmatprep.subr.bf16.mxu0 0
    %1181 = vmatpush1.bf16.xpose.msra.mxu0 0
    %1182 = vmatprep.subr.bf16.mxu0 0
    %1183 = vmatpush1.bf16.xpose.msra.mxu0 0
    %1184 = vmatprep.subr.bf16.mxu0 0
    %1185 = vmatpush1.bf16.xpose.msra.mxu0 0
    %1186 = vmatprep.subr.bf16.mxu0 0
    %1187 = vmatpush1.bf16.xpose.msra.mxu0 0
    %1188 = vmatprep.subr.bf16.mxu0 0
    %1189 = vmatpush1.bf16.xpose.msra.mxu0 0
    %1190 = vmatprep.subr.bf16.mxu0 0
    %1191 = vmatpush1.bf16.xpose.msra.mxu0 0
    %1192 = vmatprep.mubr.bf16.mxu0 0
    %1193 = vmatmul.mubr.bf16.gmra.mrb[0].mxu0 %v1155
    %v1194 = vpop.f32.mrb[0].mxu0
    %v1195 = vadd.f32 %v1010, %v1194
    %v1196 = vpop.f32.mrb[0].mxu0
    %v1197 = vpop.f32.mrb[0].mxu0
    %v1198 = vadd.f32 %v1011, %v1197
    %v1199 = vpop.f32.mrb[0].mxu0
    %1200 = vdwg.mxu0
    %vm1201 = vcmask 130048
    %v1202 = vsel %vm1201, %v1054, -inf
    %1203 = vmax.xlane.f32.xlu0 %v1202
    %v1204 = vpop.xlane.xlu0 %1203
    %v1205 = vsel %vm1201, %v1057, -inf
    %1206 = vmax.xlane.f32.xlu0 %v1205
    %v1207 = vpop.xlane.xlu0 %1206
    %v1208 = vsel %vm1201, %v1101, -inf
    %1209 = vmax.xlane.f32.xlu0 %v1208
    %v1210 = vpop.xlane.xlu0 %1209
    %v1211 = vsel %vm1201, %v1104, -inf
    %1212 = vmax.xlane.f32.xlu0 %v1211
    %v1213 = vpop.xlane.xlu0 %1212
    %v1214 = vsel %vm1201, %v1148, -inf
    %1215 = vmax.xlane.f32.xlu0 %v1214
    %v1216 = vpop.xlane.xlu0 %1215
    %v1217 = vsel %vm1201, %v1151, -inf
    %1218 = vmax.xlane.f32.xlu0 %v1217
    %v1219 = vpop.xlane.xlu0 %1218
    %v1220 = vsel %vm1201, %v1195, -inf
    %1221 = vmax.xlane.f32.xlu0 %v1220
    %v1222 = vpop.xlane.xlu0 %1221
    %v1223 = vsel %vm1201, %v1198, -inf
    %1224 = vmax.xlane.f32.xlu0 %v1223
    %v1225 = vpop.xlane.xlu0 %1224
    %v1226 = vsub.f32 %v1054, %v1204
    %v1227 = vsub.f32 %v1057, %v1207
    %v1228 = vsub.f32 %v1101, %v1210
    %v1229 = vsub.f32 %v1104, %v1213
    %v1230 = vsub.f32 %v1148, %v1216
    %v1231 = vsub.f32 %v1151, %v1219
    %v1232 = vsub.f32 %v1195, %v1222
    %v1233 = vsub.f32 %v1198, %v1225
    %v1234 = vmul.f32 %v1226, 1.442695
    %v1235 = vpow.pop %v1234
    %v1236 = vmul.f32 %v1227, 1.442695
    %v1237 = vpow.pop %v1236
    %v1238 = vmul.f32 %v1228, 1.442695
    %v1239 = vpow.pop %v1238
    %v1240 = vmul.f32 %v1229, 1.442695
    %v1241 = vpow.pop %v1240
    %v1242 = vmul.f32 %v1230, 1.442695
    %v1243 = vpow.pop %v1242
    %v1244 = vmul.f32 %v1231, 1.442695
    %v1245 = vpow.pop %v1244
    %v1246 = vmul.f32 %v1232, 1.442695
    %v1247 = vpow.pop %v1246
    %v1248 = vmul.f32 %v1233, 1.442695
    %v1249 = vpow.pop %v1248
    %v1250 = vsel %vm1201, %v1235, 0.0
    %1251 = vadd.xlane.f32.xlu0 %v1250
    %v1252 = vpop.xlane.xlu0 %1251
    %v1253 = vsel %vm1201, %v1237, 0.0
    %1254 = vadd.xlane.f32.xlu0 %v1253
    %v1255 = vpop.xlane.xlu0 %1254
    %v1256 = vsel %vm1201, %v1239, 0.0
    %1257 = vadd.xlane.f32.xlu0 %v1256
    %v1258 = vpop.xlane.xlu0 %1257
    %v1259 = vsel %vm1201, %v1241, 0.0
    %1260 = vadd.xlane.f32.xlu0 %v1259
    %v1261 = vpop.xlane.xlu0 %1260
    %v1262 = vsel %vm1201, %v1243, 0.0
    %1263 = vadd.xlane.f32.xlu0 %v1262
    %v1264 = vpop.xlane.xlu0 %1263
    %v1265 = vsel %vm1201, %v1245, 0.0
    %1266 = vadd.xlane.f32.xlu0 %v1265
    %v1267 = vpop.xlane.xlu0 %1266
    %v1268 = vsel %vm1201, %v1247, 0.0
    %1269 = vadd.xlane.f32.xlu0 %v1268
    %v1270 = vpop.xlane.xlu0 %1269
    %v1271 = vsel %vm1201, %v1249, 0.0
    %1272 = vadd.xlane.f32.xlu0 %v1271
    %v1273 = vpop.xlane.xlu0 %1272
    %v1274 = vrcp.pop %v1252
    %v1275 = vrcp.pop %v1255
    %v1276 = vrcp.pop %v1258
    %v1277 = vrcp.pop %v1261
    %v1278 = vrcp.pop %v1264
    %v1279 = vrcp.pop %v1267
    %v1280 = vrcp.pop %v1270
    %v1281 = vrcp.pop %v1273
    %v1282 = vmul.f32 %v1235, %v1274
    %v1283 = vmul.f32 %v1237, %v1275
    %v1284 = vmul.f32 %v1239, %v1276
    %v1285 = vmul.f32 %v1241, %v1277
    %v1286 = vmul.f32 %v1243, %v1278
    %v1287 = vmul.f32 %v1245, %v1279
    %v1288 = vmul.f32 %v1247, %v1280
    %v1289 = vmul.f32 %v1249, %v1281
    %v1290 = vpack.c.bf16 %v1283, %v1282
    %v1291 = vpack.c.bf16 %v1285, %v1284
    %v1292 = vpack.c.bf16 %v1287, %v1286
    %v1293 = vpack.c.bf16 %v1289, %v1288
    %v1294 = vpack.c.bf16 %v988, %v920
    %v1295 = vpack.c.bf16 %v989, %v921
    %v1296 = vpack.c.bf16 %v990, %v922
    %v1297 = vpack.c.bf16 %v991, %v923
    %v1299 = vsel %vm1201, %v1290, 0
    %1301 = vmatprep.subr.bf16.mxu0 0
    %1302 = vmatpush1.bf16.msra.mxu0 %v1294
    %1303 = vmatprep.subr.bf16.mxu0 0
    %1304 = vmatpush1.bf16.msra.mxu0 0
    %1305 = vmatprep.subr.bf16.mxu0 0
    %1306 = vmatpush1.bf16.msra.mxu0 0
    %1307 = vmatprep.subr.bf16.mxu0 0
    %1308 = vmatpush1.bf16.msra.mxu0 0
    %1309 = vmatprep.subr.bf16.mxu0 0
    %1310 = vmatpush1.bf16.msra.mxu0 0
    %1311 = vmatprep.subr.bf16.mxu0 0
    %1312 = vmatpush1.bf16.msra.mxu0 0
    %1313 = vmatprep.subr.bf16.mxu0 0
    %1314 = vmatpush1.bf16.msra.mxu0 0
    %1315 = vmatprep.subr.bf16.mxu0 0
    %1316 = vmatpush1.bf16.msra.mxu0 0
    %1317 = vmatprep.subr.bf16.mxu0 0
    %1318 = vmatpush1.bf16.msra.mxu0 0
    %1319 = vmatprep.subr.bf16.mxu0 0
    %1320 = vmatpush1.bf16.msra.mxu0 0
    %1321 = vmatprep.subr.bf16.mxu0 0
    %1322 = vmatpush1.bf16.msra.mxu0 0
    %1323 = vmatprep.subr.bf16.mxu0 0
    %1324 = vmatpush1.bf16.msra.mxu0 0
    %1325 = vmatprep.subr.bf16.mxu0 0
    %1326 = vmatpush1.bf16.msra.mxu0 0
    %1327 = vmatprep.subr.bf16.mxu0 0
    %1328 = vmatpush1.bf16.msra.mxu0 0
    %1329 = vmatprep.subr.bf16.mxu0 0
    %1330 = vmatpush1.bf16.msra.mxu0 0
    %1331 = vmatprep.subr.bf16.mxu0 0
    %1332 = vmatpush1.bf16.msra.mxu0 0
    %1333 = vmatprep.mubr.bf16.mxu0 0
    %1334 = vmatmul.mubr.bf16.gmra.mrb[0].mxu0 %v1299
    %v1335 = vpop.f32.mrb[0].mxu0
    %v1336 = vadd.f32 0.0, %v1335
    %v1337 = vpop.f32.mrb[0].mxu0
    %v1338 = vpop.f32.mrb[0].mxu0
    %v1339 = vadd.f32 0.0, %v1338
    %v1340 = vpop.f32.mrb[0].mxu0
    %1341 = vdwg.mxu0
    %v1343 = vsel %vm1201, %v1291, 0
    %1345 = vmatprep.subr.bf16.mxu0 0
    %1346 = vmatpush1.bf16.msra.mxu0 %v1295
    %1347 = vmatprep.subr.bf16.mxu0 0
    %1348 = vmatpush1.bf16.msra.mxu0 0
    %1349 = vmatprep.subr.bf16.mxu0 0
    %1350 = vmatpush1.bf16.msra.mxu0 0
    %1351 = vmatprep.subr.bf16.mxu0 0
    %1352 = vmatpush1.bf16.msra.mxu0 0
    %1353 = vmatprep.subr.bf16.mxu0 0
    %1354 = vmatpush1.bf16.msra.mxu0 0
    %1355 = vmatprep.subr.bf16.mxu0 0
    %1356 = vmatpush1.bf16.msra.mxu0 0
    %1357 = vmatprep.subr.bf16.mxu0 0
    %1358 = vmatpush1.bf16.msra.mxu0 0
    %1359 = vmatprep.subr.bf16.mxu0 0
    %1360 = vmatpush1.bf16.msra.mxu0 0
    %1361 = vmatprep.subr.bf16.mxu0 0
    %1362 = vmatpush1.bf16.msra.mxu0 0
    %1363 = vmatprep.subr.bf16.mxu0 0
    %1364 = vmatpush1.bf16.msra.mxu0 0
    %1365 = vmatprep.subr.bf16.mxu0 0
    %1366 = vmatpush1.bf16.msra.mxu0 0
    %1367 = vmatprep.subr.bf16.mxu0 0
    %1368 = vmatpush1.bf16.msra.mxu0 0
    %1369 = vmatprep.subr.bf16.mxu0 0
    %1370 = vmatpush1.bf16.msra.mxu0 0
    %1371 = vmatprep.subr.bf16.mxu0 0
    %1372 = vmatpush1.bf16.msra.mxu0 0
    %1373 = vmatprep.subr.bf16.mxu0 0
    %1374 = vmatpush1.bf16.msra.mxu0 0
    %1375 = vmatprep.subr.bf16.mxu0 0
    %1376 = vmatpush1.bf16.msra.mxu0 0
    %1377 = vmatprep.mubr.bf16.mxu0 0
    %1378 = vmatmul.mubr.bf16.gmra.mrb[0].mxu0 %v1343
    %v1379 = vpop.f32.mrb[0].mxu0
    %v1380 = vadd.f32 0.0, %v1379
    %v1381 = vpop.f32.mrb[0].mxu0
    %v1382 = vpop.f32.mrb[0].mxu0
    %v1383 = vadd.f32 0.0, %v1382
    %v1384 = vpop.f32.mrb[0].mxu0
    %1385 = vdwg.mxu0
    %v1387 = vsel %vm1201, %v1292, 0
    %1389 = vmatprep.subr.bf16.mxu0 0
    %1390 = vmatpush1.bf16.msra.mxu0 %v1296
    %1391 = vmatprep.subr.bf16.mxu0 0
    %1392 = vmatpush1.bf16.msra.mxu0 0
    %1393 = vmatprep.subr.bf16.mxu0 0
    %1394 = vmatpush1.bf16.msra.mxu0 0
    %1395 = vmatprep.subr.bf16.mxu0 0
    %1396 = vmatpush1.bf16.msra.mxu0 0
    %1397 = vmatprep.subr.bf16.mxu0 0
    %1398 = vmatpush1.bf16.msra.mxu0 0
    %1399 = vmatprep.subr.bf16.mxu0 0
    %1400 = vmatpush1.bf16.msra.mxu0 0
    %1401 = vmatprep.subr.bf16.mxu0 0
    %1402 = vmatpush1.bf16.msra.mxu0 0
    %1403 = vmatprep.subr.bf16.mxu0 0
    %1404 = vmatpush1.bf16.msra.mxu0 0
    %1405 = vmatprep.subr.bf16.mxu0 0
    %1406 = vmatpush1.bf16.msra.mxu0 0
    %1407 = vmatprep.subr.bf16.mxu0 0
    %1408 = vmatpush1.bf16.msra.mxu0 0
    %1409 = vmatprep.subr.bf16.mxu0 0
    %1410 = vmatpush1.bf16.msra.mxu0 0
    %1411 = vmatprep.subr.bf16.mxu0 0
    %1412 = vmatpush1.bf16.msra.mxu0 0
    %1413 = vmatprep.subr.bf16.mxu0 0
    %1414 = vmatpush1.bf16.msra.mxu0 0
    %1415 = vmatprep.subr.bf16.mxu0 0
    %1416 = vmatpush1.bf16.msra.mxu0 0
    %1417 = vmatprep.subr.bf16.mxu0 0
    %1418 = vmatpush1.bf16.msra.mxu0 0
    %1419 = vmatprep.subr.bf16.mxu0 0
    %1420 = vmatpush1.bf16.msra.mxu0 0
    %1421 = vmatprep.mubr.bf16.mxu0 0
    %1422 = vmatmul.mubr.bf16.gmra.mrb[0].mxu0 %v1387
    %v1423 = vpop.f32.mrb[0].mxu0
    %v1424 = vadd.f32 0.0, %v1423
    %v1425 = vpop.f32.mrb[0].mxu0
    %v1426 = vpop.f32.mrb[0].mxu0
    %v1427 = vadd.f32 0.0, %v1426
    %v1428 = vpop.f32.mrb[0].mxu0
    %1429 = vdwg.mxu0
    %v1431 = vsel %vm1201, %v1293, 0
    %1433 = vmatprep.subr.bf16.mxu0 0
    %1434 = vmatpush1.bf16.msra.mxu0 %v1297
    %1435 = vmatprep.subr.bf16.mxu0 0
    %1436 = vmatpush1.bf16.msra.mxu0 0
    %1437 = vmatprep.subr.bf16.mxu0 0
    %1438 = vmatpush1.bf16.msra.mxu0 0
    %1439 = vmatprep.subr.bf16.mxu0 0
    %1440 = vmatpush1.bf16.msra.mxu0 0
    %1441 = vmatprep.subr.bf16.mxu0 0
    %1442 = vmatpush1.bf16.msra.mxu0 0
    %1443 = vmatprep.subr.bf16.mxu0 0
    %1444 = vmatpush1.bf16.msra.mxu0 0
    %1445 = vmatprep.subr.bf16.mxu0 0
    %1446 = vmatpush1.bf16.msra.mxu0 0
    %1447 = vmatprep.subr.bf16.mxu0 0
    %1448 = vmatpush1.bf16.msra.mxu0 0
    %1449 = vmatprep.subr.bf16.mxu0 0
    %1450 = vmatpush1.bf16.msra.mxu0 0
    %1451 = vmatprep.subr.bf16.mxu0 0
    %1452 = vmatpush1.bf16.msra.mxu0 0
    %1453 = vmatprep.subr.bf16.mxu0 0
    %1454 = vmatpush1.bf16.msra.mxu0 0
    %1455 = vmatprep.subr.bf16.mxu0 0
    %1456 = vmatpush1.bf16.msra.mxu0 0
    %1457 = vmatprep.subr.bf16.mxu0 0
    %1458 = vmatpush1.bf16.msra.mxu0 0
    %1459 = vmatprep.subr.bf16.mxu0 0
    %1460 = vmatpush1.bf16.msra.mxu0 0
    %1461 = vmatprep.subr.bf16.mxu0 0
    %1462 = vmatpush1.bf16.msra.mxu0 0
    %1463 = vmatprep.subr.bf16.mxu0 0
    %1464 = vmatpush1.bf16.msra.mxu0 0
    %1465 = vmatprep.mubr.bf16.mxu0 0
    %1466 = vmatmul.mubr.bf16.gmra.mrb[0].mxu0 %v1431
    %v1467 = vpop.f32.mrb[0].mxu0
    %v1468 = vadd.f32 0.0, %v1467
    %v1469 = vpop.f32.mrb[0].mxu0
    %v1470 = vpop.f32.mrb[0].mxu0
    %v1471 = vadd.f32 0.0, %v1470
    %v1472 = vpop.f32.mrb[0].mxu0
    %1473 = vdwg.mxu0
    %v1474 = vcombine.low %v1336, %v1424
    %v1475 = vcombine.high %v1336, %v1424
    %v1477 = vunpack.c.l.s4 1983009808
    %v1478 = vunpack.c.0.s8 %v1477
    %v1479 = vlaneseq
    %v1480 = vshrl.u32 %v1479, 7
    %v1481 = vsub.s32 %v1478, %v1480
    %v1482 = vrot.slane %v1474, %v1481
    %v1484 = vunpack.c.l.s4 1983009808
    %v1485 = vunpack.c.0.s8 %v1484
    %v1486 = vlaneseq
    %v1487 = vshrl.u32 %v1486, 7
    %v1488 = vsub.s32 %v1485, %v1487
    %v1489 = vrot.slane %v1475, %v1488
    %v1490 = vcombine.low %v1380, %v1468
    %v1491 = vcombine.high %v1380, %v1468
    %v1493 = vunpack.c.l.s4 1983009808
    %v1494 = vunpack.c.0.s8 %v1493
    %v1495 = vlaneseq
    %v1496 = vshrl.u32 %v1495, 7
    %v1497 = vsub.s32 %v1494, %v1496
    %v1498 = vrot.slane %v1490, %v1497
    %v1500 = vunpack.c.l.s4 1983009808
    %v1501 = vunpack.c.0.s8 %v1500
    %v1502 = vlaneseq
    %v1503 = vshrl.u32 %v1502, 7
    %v1504 = vsub.s32 %v1501, %v1503
    %v1505 = vrot.slane %v1491, %v1504
    %v1506 = vcombine.low %v1482, %v1498
    %v1507 = vcombine.high %v1482, %v1498
    %v1509 = vunpack.c.l.s4 1934713408
    %v1510 = vunpack.c.0.s8 %v1509
    %v1511 = vlaneseq
    %v1512 = vshrl.u32 %v1511, 7
    %v1513 = vsub.s32 %v1510, %v1512
    %v1514 = vrot.slane %v1506, %v1513
    %v1516 = vunpack.c.l.s4 1934713408
    %v1517 = vunpack.c.0.s8 %v1516
    %v1518 = vlaneseq
    %v1519 = vshrl.u32 %v1518, 7
    %v1520 = vsub.s32 %v1517, %v1519
    %v1521 = vrot.slane %v1507, %v1520
    %v1522 = vcombine.low %v1489, %v1505
    %v1523 = vcombine.high %v1489, %v1505
    %v1525 = vunpack.c.l.s4 1934713408
    %v1526 = vunpack.c.0.s8 %v1525
    %v1527 = vlaneseq
    %v1528 = vshrl.u32 %v1527, 7
    %v1529 = vsub.s32 %v1526, %v1528
    %v1530 = vrot.slane %v1522, %v1529
    %v1532 = vunpack.c.l.s4 1934713408
    %v1533 = vunpack.c.0.s8 %v1532
    %v1534 = vlaneseq
    %v1535 = vshrl.u32 %v1534, 7
    %v1536 = vsub.s32 %v1533, %v1535
    %v1537 = vrot.slane %v1523, %v1536
    %v1538 = vcombine.high %v1514, 0.0
    %v1539 = vcombine.high %v1521, 0.0
    %v1540 = vcombine.high %v1530, 0.0
    %v1541 = vcombine.high %v1537, 0.0
    %v1542 = vcombine.low %v1339, %v1427
    %v1543 = vcombine.high %v1339, %v1427
    %v1545 = vunpack.c.l.s4 1983009808
    %v1546 = vunpack.c.0.s8 %v1545
    %v1547 = vlaneseq
    %v1548 = vshrl.u32 %v1547, 7
    %v1549 = vsub.s32 %v1546, %v1548
    %v1550 = vrot.slane %v1542, %v1549
    %v1552 = vunpack.c.l.s4 1983009808
    %v1553 = vunpack.c.0.s8 %v1552
    %v1554 = vlaneseq
    %v1555 = vshrl.u32 %v1554, 7
    %v1556 = vsub.s32 %v1553, %v1555
    %v1557 = vrot.slane %v1543, %v1556
    %v1558 = vcombine.low %v1383, %v1471
    %v1559 = vcombine.high %v1383, %v1471
    %v1561 = vunpack.c.l.s4 1983009808
    %v1562 = vunpack.c.0.s8 %v1561
    %v1563 = vlaneseq
    %v1564 = vshrl.u32 %v1563, 7
    %v1565 = vsub.s32 %v1562, %v1564
    %v1566 = vrot.slane %v1558, %v1565
    %v1568 = vunpack.c.l.s4 1983009808
    %v1569 = vunpack.c.0.s8 %v1568
    %v1570 = vlaneseq
    %v1571 = vshrl.u32 %v1570, 7
    %v1572 = vsub.s32 %v1569, %v1571
    %v1573 = vrot.slane %v1559, %v1572
    %v1574 = vcombine.low %v1550, %v1566
    %v1575 = vcombine.high %v1550, %v1566
    %v1577 = vunpack.c.l.s4 1934713408
    %v1578 = vunpack.c.0.s8 %v1577
    %v1579 = vlaneseq
    %v1580 = vshrl.u32 %v1579, 7
    %v1581 = vsub.s32 %v1578, %v1580
    %v1582 = vrot.slane %v1574, %v1581
    %v1584 = vunpack.c.l.s4 1934713408
    %v1585 = vunpack.c.0.s8 %v1584
    %v1586 = vlaneseq
    %v1587 = vshrl.u32 %v1586, 7
    %v1588 = vsub.s32 %v1585, %v1587
    %v1589 = vrot.slane %v1575, %v1588
    %v1590 = vcombine.low %v1557, %v1573
    %v1591 = vcombine.high %v1557, %v1573
    %v1593 = vunpack.c.l.s4 1934713408
    %v1594 = vunpack.c.0.s8 %v1593
    %v1595 = vlaneseq
    %v1596 = vshrl.u32 %v1595, 7
    %v1597 = vsub.s32 %v1594, %v1596
    %v1598 = vrot.slane %v1590, %v1597
    %v1600 = vunpack.c.l.s4 1934713408
    %v1601 = vunpack.c.0.s8 %v1600
    %v1602 = vlaneseq
    %v1603 = vshrl.u32 %v1602, 7
    %v1604 = vsub.s32 %v1601, %v1603
    %v1605 = vrot.slane %v1591, %v1604
    %v1606 = vcombine.high %v1582, 0.0
    %v1607 = vcombine.high %v1589, 0.0
    %v1608 = vcombine.high %v1598, 0.0
    %v1609 = vcombine.high %v1605, 0.0
    %v1610 = vcombine.low %v1514, %v1521
    %v1612 = vunpack.c.l.s4 1983009808
    %v1613 = vunpack.c.0.s8 %v1612
    %v1614 = vlaneseq
    %v1615 = vshrl.u32 %v1614, 7
    %v1616 = vsub.s32 %v1613, %v1615
    %v1617 = vrot.slane %v1610, %v1616
    %v1618 = vcombine.low %v1538, %v1539
    %v1620 = vunpack.c.l.s4 1983009808
    %v1621 = vunpack.c.0.s8 %v1620
    %v1622 = vlaneseq
    %v1623 = vshrl.u32 %v1622, 7
    %v1624 = vsub.s32 %v1621, %v1623
    %v1625 = vrot.slane %v1618, %v1624
    %v1626 = vcombine.low %v1530, %v1537
    %v1628 = vunpack.c.l.s4 1983009808
    %v1629 = vunpack.c.0.s8 %v1628
    %v1630 = vlaneseq
    %v1631 = vshrl.u32 %v1630, 7
    %v1632 = vsub.s32 %v1629, %v1631
    %v1633 = vrot.slane %v1626, %v1632
    %v1634 = vcombine.low %v1540, %v1541
    %v1636 = vunpack.c.l.s4 1983009808
    %v1637 = vunpack.c.0.s8 %v1636
    %v1638 = vlaneseq
    %v1639 = vshrl.u32 %v1638, 7
    %v1640 = vsub.s32 %v1637, %v1639
    %v1641 = vrot.slane %v1634, %v1640
    %v1642 = vcombine.low %v1617, %v1625
    %v1643 = vcombine.high %v1617, %v1625
    %v1645 = vunpack.c.l.s4 1934713408
    %v1646 = vunpack.c.0.s8 %v1645
    %v1647 = vlaneseq
    %v1648 = vshrl.u32 %v1647, 7
    %v1649 = vsub.s32 %v1646, %v1648
    %v1650 = vrot.slane %v1642, %v1649
    %v1652 = vunpack.c.l.s4 1934713408
    %v1653 = vunpack.c.0.s8 %v1652
    %v1654 = vlaneseq
    %v1655 = vshrl.u32 %v1654, 7
    %v1656 = vsub.s32 %v1653, %v1655
    %v1657 = vrot.slane %v1643, %v1656
    %v1658 = vcombine.low %v1633, %v1641
    %v1659 = vcombine.high %v1633, %v1641
    %v1661 = vunpack.c.l.s4 1934713408
    %v1662 = vunpack.c.0.s8 %v1661
    %v1663 = vlaneseq
    %v1664 = vshrl.u32 %v1663, 7
    %v1665 = vsub.s32 %v1662, %v1664
    %v1666 = vrot.slane %v1658, %v1665
    %v1668 = vunpack.c.l.s4 1934713408
    %v1669 = vunpack.c.0.s8 %v1668
    %v1670 = vlaneseq
    %v1671 = vshrl.u32 %v1670, 7
    %v1672 = vsub.s32 %v1669, %v1671
    %v1673 = vrot.slane %v1659, %v1672
    %v1674 = vcombine.low %v1650, %v1666
    %v1675 = vcombine.high %v1650, %v1666
    %v1676 = vcombine.low %v1657, %v1673
    %v1677 = vcombine.high %v1657, %v1673
    %v1678 = vcombine.low %v1582, %v1589
    %v1680 = vunpack.c.l.s4 1983009808
    %v1681 = vunpack.c.0.s8 %v1680
    %v1682 = vlaneseq
    %v1683 = vshrl.u32 %v1682, 7
    %v1684 = vsub.s32 %v1681, %v1683
    %v1685 = vrot.slane %v1678, %v1684
    %v1686 = vcombine.low %v1606, %v1607
    %v1688 = vunpack.c.l.s4 1983009808
    %v1689 = vunpack.c.0.s8 %v1688
    %v1690 = vlaneseq
    %v1691 = vshrl.u32 %v1690, 7
    %v1692 = vsub.s32 %v1689, %v1691
    %v1693 = vrot.slane %v1686, %v1692
    %v1694 = vcombine.low %v1598, %v1605
    %v1696 = vunpack.c.l.s4 1983009808
    %v1697 = vunpack.c.0.s8 %v1696
    %v1698 = vlaneseq
    %v1699 = vshrl.u32 %v1698, 7
    %v1700 = vsub.s32 %v1697, %v1699
    %v1701 = vrot.slane %v1694, %v1700
    %v1702 = vcombine.low %v1608, %v1609
    %v1704 = vunpack.c.l.s4 1983009808
    %v1705 = vunpack.c.0.s8 %v1704
    %v1706 = vlaneseq
    %v1707 = vshrl.u32 %v1706, 7
    %v1708 = vsub.s32 %v1705, %v1707
    %v1709 = vrot.slane %v1702, %v1708
    %v1710 = vcombine.low %v1685, %v1693
    %v1711 = vcombine.high %v1685, %v1693
    %v1713 = vunpack.c.l.s4 1934713408
    %v1714 = vunpack.c.0.s8 %v1713
    %v1715 = vlaneseq
    %v1716 = vshrl.u32 %v1715, 7
    %v1717 = vsub.s32 %v1714, %v1716
    %v1718 = vrot.slane %v1710, %v1717
    %v1720 = vunpack.c.l.s4 1934713408
    %v1721 = vunpack.c.0.s8 %v1720
    %v1722 = vlaneseq
    %v1723 = vshrl.u32 %v1722, 7
    %v1724 = vsub.s32 %v1721, %v1723
    %v1725 = vrot.slane %v1711, %v1724
    %v1726 = vcombine.low %v1701, %v1709
    %v1727 = vcombine.high %v1701, %v1709
    %v1729 = vunpack.c.l.s4 1934713408
    %v1730 = vunpack.c.0.s8 %v1729
    %v1731 = vlaneseq
    %v1732 = vshrl.u32 %v1731, 7
    %v1733 = vsub.s32 %v1730, %v1732
    %v1734 = vrot.slane %v1726, %v1733
    %v1736 = vunpack.c.l.s4 1934713408
    %v1737 = vunpack.c.0.s8 %v1736
    %v1738 = vlaneseq
    %v1739 = vshrl.u32 %v1738, 7
    %v1740 = vsub.s32 %v1737, %v1739
    %v1741 = vrot.slane %v1727, %v1740
    %v1742 = vcombine.low %v1718, %v1734
    %v1743 = vcombine.high %v1718, %v1734
    %v1744 = vcombine.low %v1725, %v1741
    %v1745 = vcombine.high %v1725, %v1741
    %1748 = vrot.lane.b32.xlu0 %v1675, 8
    %v1749 = vpop.permute.xlu0 %1748
    %1750 = vrot.lane.b32.xlu0 %v1743, 8
    %v1751 = vpop.permute.xlu0 %1750
    %1756 = vrot.lane.b32.xlu0 %v1676, 16
    %v1757 = vpop.permute.xlu0 %1756
    %1758 = vrot.lane.b32.xlu0 %v1744, 16
    %v1759 = vpop.permute.xlu0 %1758
    %1764 = vrot.lane.b32.xlu0 %v1677, 24
    %v1765 = vpop.permute.xlu0 %1764
    %1766 = vrot.lane.b32.xlu0 %v1745, 24
    %v1767 = vpop.permute.xlu0 %1766
    %v1770 = vsel %vm1012, %v1674, %v1749
    %v1771 = vsel %vm1012, %v1742, %v1751
    %v1772 = vsel %vm1201, %v1770, %v1757
    %v1773 = vsel %vm1201, %v1771, %v1759
    %vm1774 = vcmask 195584
    %v1775 = vsel %vm1774, %v1772, %v1765
    %v1776 = vsel %vm1774, %v1773, %v1767
    %v1777 = vpack.c.bf16 %v1776, %v1775
    %v1778 = vld [vmem:[%s2] sm:$0xf]
    %v1779 = vld [vmem:[%s2 + $0x4] sm:$0xf]
    %v1780 = vld [vmem:[%s2 + $0x8] sm:$0xf]
    %v1781 = vld [vmem:[%s2 + $0xc] sm:$0xf]
    %v1782 = vlaneseq
    %v1783 = vshrl.u32 %v1782, 7
    %v1784 = vsub.s32 1, %v1783
    %v1785 = vrot.slane %v41, %v1784
    %v1790 = vunpack.c.l.b16 %v1778
    %v1791 = vunpack.c.l.b16 %v1779
    %v1792 = vunpack.c.l.b16 %v1780
    %v1793 = vunpack.c.l.b16 %v1781
    %v1794 = vpack.c.b16 %v1791, %v1790
    %v1795 = vpack.c.b16 %v1793, %v1792
    %v1799 = vsel %vm63, %v1777, 0
    %1801 = vmatprep.subr.bf16.mxu0 0
    %1802 = vmatpush1.bf16.msra.mxu0 %v1794
    %1803 = vmatprep.subr.bf16.mxu0 0
    %1804 = vmatpush1.bf16.msra.mxu0 %v1795
    %1805 = vmatprep.subr.bf16.mxu0 0
    %1806 = vmatpush1.bf16.msra.mxu0 0
    %1807 = vmatprep.subr.bf16.mxu0 0
    %1808 = vmatpush1.bf16.msra.mxu0 0
    %1809 = vmatprep.subr.bf16.mxu0 0
    %1810 = vmatpush1.bf16.msra.mxu0 0
    %1811 = vmatprep.subr.bf16.mxu0 0
    %1812 = vmatpush1.bf16.msra.mxu0 0
    %1813 = vmatprep.subr.bf16.mxu0 0
    %1814 = vmatpush1.bf16.msra.mxu0 0
    %1815 = vmatprep.subr.bf16.mxu0 0
    %1816 = vmatpush1.bf16.msra.mxu0 0
    %1817 = vmatprep.subr.bf16.mxu0 0
    %1818 = vmatpush1.bf16.msra.mxu0 0
    %1819 = vmatprep.subr.bf16.mxu0 0
    %1820 = vmatpush1.bf16.msra.mxu0 0
    %1821 = vmatprep.subr.bf16.mxu0 0
    %1822 = vmatpush1.bf16.msra.mxu0 0
    %1823 = vmatprep.subr.bf16.mxu0 0
    %1824 = vmatpush1.bf16.msra.mxu0 0
    %1825 = vmatprep.subr.bf16.mxu0 0
    %1826 = vmatpush1.bf16.msra.mxu0 0
    %1827 = vmatprep.subr.bf16.mxu0 0
    %1828 = vmatpush1.bf16.msra.mxu0 0
    %1829 = vmatprep.subr.bf16.mxu0 0
    %1830 = vmatpush1.bf16.msra.mxu0 0
    %1831 = vmatprep.subr.bf16.mxu0 0
    %1832 = vmatpush1.bf16.msra.mxu0 0
    %1833 = vmatprep.mubr.bf16.mxu0 0
    %1834 = vmatmul.mubr.bf16.gmra.mrb[0].mxu0 %v1799
    %v1835 = vpop.f32.mrb[0].mxu0
    %v1836 = vadd.f32 %v1785, %v1835
    %v1837 = vpop.f32.mrb[0].mxu0
    %v1838 = vpop.f32.mrb[0].mxu0
    %v1839 = vadd.f32 %v1785, %v1838
    %v1840 = vpop.f32.mrb[0].mxu0
    %1841 = vdwg.mxu0
    %v1842 = vadd.f32 %v39, %v1836
    %v1843 = vadd.f32 %v40, %v1839
    %v1844 = vsel %vm63, %v1842, 0.0
    %1845 = vadd.xlane.f32.xlu0 %v1844
    %v1846 = vpop.xlane.xlu0 %1845
    %v1847 = vsel %vm63, %v1843, 0.0
    %1848 = vadd.xlane.f32.xlu0 %v1847
    %v1849 = vpop.xlane.xlu0 %1848
    %v1850 = vrcp.pop 32.0
    %v1851 = vmul.f32 %v1846, %v1850
    %v1852 = vmul.f32 %v1849, %v1850
    %v1853 = vsub.f32 %v1842, %v1851
    %v1854 = vsub.f32 %v1843, %v1852
    %v1855 = vmul.f32 %v1853, %v1853
    %v1856 = vmul.f32 %v1854, %v1854
    %v1857 = vsel %vm63, %v1855, 0.0
    %1858 = vadd.xlane.f32.xlu0 %v1857
    %v1859 = vpop.xlane.xlu0 %1858
    %v1860 = vsel %vm63, %v1856, 0.0
    %1861 = vadd.xlane.f32.xlu0 %v1860
    %v1862 = vpop.xlane.xlu0 %1861
    %v1863 = vmul.f32 %v1859, %v1850
    %v1864 = vmul.f32 %v1862, %v1850
    %v1865 = vadd.f32 %v1863, 1e-05
    %v1866 = vadd.f32 %v1864, 1e-05
    %v1867 = vrsqrt.pop %v1865
    %v1868 = vrsqrt.pop %v1866
    %v1869 = vmul.f32 %v1853, %v1867
    %v1870 = vmul.f32 %v1854, %v1868
    %v1871 = vlaneseq
    %v1872 = vshrl.u32 %v1871, 7
    %v1873 = vsub.s32 4, %v1872
    %v1874 = vrot.slane %v41, %v1873
    %v1875 = vmul.f32 %v1869, %v1874
    %v1876 = vmul.f32 %v1870, %v1874
    %v1877 = vlaneseq
    %v1878 = vshrl.u32 %v1877, 7
    %v1879 = vsub.s32 5, %v1878
    %v1880 = vrot.slane %v41, %v1879
    %v1881 = vadd.f32 %v1875, %v1880
    %v1882 = vadd.f32 %v1876, %v1880
    %v1883 = vpack.c.bf16 %v1882, %v1881
    %v1884 = vld [vmem:[#allocation2] sm:$0xf]
    %v1885 = vld [vmem:[#allocation2 + $0x4] sm:$0xf]
    %v1886 = vld [vmem:[#allocation2 + $0x8] sm:$0xf]
    %v1887 = vld [vmem:[#allocation2 + $0xc] sm:$0xf]
    %v1888 = vlaneseq
    %v1889 = vshrl.u32 %v1888, 7
    %v1890 = vsub.s32 2, %v1889
    %v1891 = vrot.slane %v41, %v1890
    %v1896 = vunpack.c.l.b16 %v1884
    %v1897 = vunpack.c.l.b16 %v1885
    %v1898 = vunpack.c.l.b16 %v1886
    %v1899 = vunpack.c.l.b16 %v1887
    %v1900 = vpack.c.b16 %v1897, %v1896
    %v1901 = vpack.c.b16 %v1899, %v1898
    %v1905 = vsel %vm63, %v1883, 0
    %1907 = vmatprep.subr.bf16.mxu0 0
    %1908 = vmatpush1.bf16.msra.mxu0 %v1900
    %1909 = vmatprep.subr.bf16.mxu0 0
    %1910 = vmatpush1.bf16.msra.mxu0 %v1901
    %1911 = vmatprep.subr.bf16.mxu0 0
    %1912 = vmatpush1.bf16.msra.mxu0 0
    %1913 = vmatprep.subr.bf16.mxu0 0
    %1914 = vmatpush1.bf16.msra.mxu0 0
    %1915 = vmatprep.subr.bf16.mxu0 0
    %1916 = vmatpush1.bf16.msra.mxu0 0
    %1917 = vmatprep.subr.bf16.mxu0 0
    %1918 = vmatpush1.bf16.msra.mxu0 0
    %1919 = vmatprep.subr.bf16.mxu0 0
    %1920 = vmatpush1.bf16.msra.mxu0 0
    %1921 = vmatprep.subr.bf16.mxu0 0
    %1922 = vmatpush1.bf16.msra.mxu0 0
    %1923 = vmatprep.subr.bf16.mxu0 0
    %1924 = vmatpush1.bf16.msra.mxu0 0
    %1925 = vmatprep.subr.bf16.mxu0 0
    %1926 = vmatpush1.bf16.msra.mxu0 0
    %1927 = vmatprep.subr.bf16.mxu0 0
    %1928 = vmatpush1.bf16.msra.mxu0 0
    %1929 = vmatprep.subr.bf16.mxu0 0
    %1930 = vmatpush1.bf16.msra.mxu0 0
    %1931 = vmatprep.subr.bf16.mxu0 0
    %1932 = vmatpush1.bf16.msra.mxu0 0
    %1933 = vmatprep.subr.bf16.mxu0 0
    %1934 = vmatpush1.bf16.msra.mxu0 0
    %1935 = vmatprep.subr.bf16.mxu0 0
    %1936 = vmatpush1.bf16.msra.mxu0 0
    %1937 = vmatprep.subr.bf16.mxu0 0
    %1938 = vmatpush1.bf16.msra.mxu0 0
    %1939 = vmatprep.mubr.bf16.mxu0 0
    %1940 = vmatmul.mubr.bf16.gmra.mrb[0].mxu0 %v1905
    %v1941 = vpop.f32.mrb[0].mxu0
    %v1942 = vadd.f32 %v1891, %v1941
    %v1943 = vpop.f32.mrb[0].mxu0
    %v1944 = vpop.f32.mrb[0].mxu0
    %v1945 = vadd.f32 %v1891, %v1944
    %v1946 = vpop.f32.mrb[0].mxu0
    %1947 = vdwg.mxu0
    %v1948 = vmax.f32 %v1942, 0.0
    %v1949 = vmax.f32 %v1945, 0.0
    %v1950 = vpack.c.bf16 %v1949, %v1948
    %v1951 = vld [vmem:[%s4] sm:$0xf]
    %v1952 = vld [vmem:[%s4 + $0x4] sm:$0xf]
    %v1953 = vld [vmem:[%s4 + $0x8] sm:$0xf]
    %v1954 = vld [vmem:[%s4 + $0xc] sm:$0xf]
    %v1955 = vld [vmem:[%s4 + $0x10] sm:$0xf]
    %v1956 = vld [vmem:[%s4 + $0x14] sm:$0xf]
    %v1957 = vld [vmem:[%s4 + $0x18] sm:$0xf]
    %v1958 = vld [vmem:[%s4 + $0x1c] sm:$0xf]
    %v1959 = vlaneseq
    %v1960 = vshrl.u32 %v1959, 7
    %v1961 = vsub.s32 3, %v1960
    %v1962 = vrot.slane %v41, %v1961
    %v1971 = vunpack.c.l.b16 %v1951
    %v1972 = vunpack.c.l.b16 %v1952
    %v1973 = vunpack.c.l.b16 %v1953
    %v1974 = vunpack.c.l.b16 %v1954
    %v1975 = vunpack.c.l.b16 %v1955
    %v1976 = vunpack.c.l.b16 %v1956
    %v1977 = vunpack.c.l.b16 %v1957
    %v1978 = vunpack.c.l.b16 %v1958
    %v1979 = vpack.c.b16 %v1972, %v1971
    %v1980 = vpack.c.b16 %v1974, %v1973
    %v1981 = vpack.c.b16 %v1976, %v1975
    %v1982 = vpack.c.b16 %v1978, %v1977
    %vm1987 = vcmask 523264
    %v1989 = vsel %vm1987, %v1950, 0
    %1991 = vmatprep.subr.bf16.mxu0 0
    %1992 = vmatpush1.bf16.msra.mxu0 %v1979
    %1993 = vmatprep.subr.bf16.mxu0 0
    %1994 = vmatpush1.bf16.msra.mxu0 %v1980
    %1995 = vmatprep.subr.bf16.mxu0 0
    %1996 = vmatpush1.bf16.msra.mxu0 %v1981
    %1997 = vmatprep.subr.bf16.mxu0 0
    %1998 = vmatpush1.bf16.msra.mxu0 %v1982
    %1999 = vmatprep.subr.bf16.mxu0 0
    %2000 = vmatpush1.bf16.msra.mxu0 0
    %2001 = vmatprep.subr.bf16.mxu0 0
    %2002 = vmatpush1.bf16.msra.mxu0 0
    %2003 = vmatprep.subr.bf16.mxu0 0
    %2004 = vmatpush1.bf16.msra.mxu0 0
    %2005 = vmatprep.subr.bf16.mxu0 0
    %2006 = vmatpush1.bf16.msra.mxu0 0
    %2007 = vmatprep.subr.bf16.mxu0 0
    %2008 = vmatpush1.bf16.msra.mxu0 0
    %2009 = vmatprep.subr.bf16.mxu0 0
    %2010 = vmatpush1.bf16.msra.mxu0 0
    %2011 = vmatprep.subr.bf16.mxu0 0
    %2012 = vmatpush1.bf16.msra.mxu0 0
    %2013 = vmatprep.subr.bf16.mxu0 0
    %2014 = vmatpush1.bf16.msra.mxu0 0
    %2015 = vmatprep.subr.bf16.mxu0 0
    %2016 = vmatpush1.bf16.msra.mxu0 0
    %2017 = vmatprep.subr.bf16.mxu0 0
    %2018 = vmatpush1.bf16.msra.mxu0 0
    %2019 = vmatprep.subr.bf16.mxu0 0
    %2020 = vmatpush1.bf16.msra.mxu0 0
    %2021 = vmatprep.subr.bf16.mxu0 0
    %2022 = vmatpush1.bf16.msra.mxu0 0
    %2023 = vmatprep.mubr.bf16.mxu0 0
    %2024 = vmatmul.mubr.bf16.gmra.mrb[0].mxu0 %v1989
    %v2025 = vpop.f32.mrb[0].mxu0
    %v2026 = vadd.f32 %v1962, %v2025
    %v2027 = vpop.f32.mrb[0].mxu0
    %v2028 = vpop.f32.mrb[0].mxu0
    %v2029 = vadd.f32 %v1962, %v2028
    %v2030 = vpop.f32.mrb[0].mxu0
    %2031 = vdwg.mxu0
    %v2032 = vadd.f32 %v1881, %v2026
    %v2033 = vadd.f32 %v1882, %v2029
    %v2034 = vsel %vm63, %v2032, 0.0
    %2035 = vadd.xlane.f32.xlu0 %v2034
    %v2036 = vpop.xlane.xlu0 %2035
    %v2037 = vsel %vm63, %v2033, 0.0
    %2038 = vadd.xlane.f32.xlu0 %v2037
    %v2039 = vpop.xlane.xlu0 %2038
    %v2040 = vmul.f32 %v2036, %v1850
    %v2041 = vmul.f32 %v2039, %v1850
    %v2042 = vsub.f32 %v2032, %v2040
    %v2043 = vsub.f32 %v2033, %v2041
    %v2044 = vmul.f32 %v2042, %v2042
    %v2045 = vmul.f32 %v2043, %v2043
    %v2046 = vsel %vm63, %v2044, 0.0
    %2047 = vadd.xlane.f32.xlu0 %v2046
    %v2048 = vpop.xlane.xlu0 %2047
    %v2049 = vsel %vm63, %v2045, 0.0
    %2050 = vadd.xlane.f32.xlu0 %v2049
    %v2051 = vpop.xlane.xlu0 %2050
    %v2052 = vmul.f32 %v2048, %v1850
    %v2053 = vmul.f32 %v2051, %v1850
    %v2054 = vadd.f32 %v2052, 1e-05
    %v2055 = vadd.f32 %v2053, 1e-05
    %v2056 = vrsqrt.pop %v2054
    %v2057 = vrsqrt.pop %v2055
    %v2058 = vmul.f32 %v2042, %v2056
    %v2059 = vmul.f32 %v2043, %v2057
    %v2060 = vlaneseq
    %v2061 = vshrl.u32 %v2060, 7
    %v2062 = vsub.s32 6, %v2061
    %v2063 = vrot.slane %v41, %v2062
    %v2064 = vmul.f32 %v2058, %v2063
    %v2065 = vmul.f32 %v2059, %v2063
    %v2066 = vlaneseq
    %v2067 = vshrl.u32 %v2066, 7
    %v2068 = vsub.s32 7, %v2067
    %v2069 = vrot.slane %v41, %v2068
    %v2070 = vadd.f32 %v2064, %v2069
    %v2071 = vadd.f32 %v2065, %v2069
    %2072 = vst.msk [vmem:[#allocation5] sm:$0xff] %vm63, %v2070
    %2073 = vst.msk [vmem:[#allocation5 + $0x8] sm:$0xff] %vm63, %v2071
    // Predicated region
    $region30: #{tpu_custom_call.1} parent=1 // pred_check
      _
    $region31: #{tpu_custom_call.1} parent=1 // pred_check_branch
      %2075 = sbr.rel (0) target = $region33
    $region32: #{tpu_custom_call.1} parent=1 // pred_region
      %s2077 = ssub.s32 256, 256
      %2078 = vsyncadd [#allocation4], %s2077
      %s2079 = sshll.u32 [#allocation5], 4
      %s2080 = int_to_ptr.vmem [resolvable:$true] %s2079
      %2085 = dma.vmem_to_hbm [thread:$0]  %s2080, 256, %s6, [#allocation4], 128, 128, 8
    $region33: #{tpu_custom_call.1} parent=1 // pred_fallthru
      _
    // Predicated region
    $region34: #{tpu_custom_call.1} parent=1 // pred_check
      _
    $region35: #{tpu_custom_call.1} parent=1 // pred_check_branch
      %2087 = sbr.rel (0) target = $region37
    $region36: #{tpu_custom_call.1} parent=1 // pred_region
      %2088 = dma.done [#allocation4], 256
    $region37: #{tpu_custom_call.1} parent=1 // pred_fallthru
      _
    %2089 = vsyncpa [#allocation3], 1
    %2090 = vsyncpa [#allocation4], 1

</llo_original>
